<compile_context>
chip_gen: v5e
topology: v5e:2x2
jax: 0.10.0
libtpu: 0.0.40
codegen_flags: <defaults>
</compile_context>

<pallas_src>
import functools

import jax
import jax.numpy as jnp
from jax import lax
from jax.experimental import pallas as pl
from jax.experimental.pallas import tpu as pltpu


def prepare_params(emb_w, w1, b1, b2):
    """One-time (outside the per-call path) parameter preparation.

    Matmul weights are stored in bf16 (halves HBM->VMEM DMA traffic, MXU
    native), biases in f32 as (1, n) rows.  No transposes anywhere -- the
    kernel contracts via dot_general dimension_numbers instead.  The f32
    table is kept only as the 32-bit-aligned gather source for the 7 token
    rows per context.
    """
    ntoken, ninp = emb_w.shape
    nhid, ctx_ninp = w1.shape
    assert nhid == ninp, "weight tying (linear2.weight = embeddings.weight) needs nhid == ninp"
    return {
        "emb_f32": jnp.asarray(emb_w, jnp.float32),       # gather source (rows only)
        "emb_bf16": jnp.asarray(emb_w, jnp.bfloat16),     # tied output weight (streamed)
        "w1": jnp.asarray(w1, jnp.bfloat16),              # native (nhid, 7*ninp) layout
        "b1": jnp.asarray(b1, jnp.float32).reshape(1, nhid),
        "b2": jnp.asarray(b2, jnp.float32).reshape(1, ntoken),
    }


def _fnn_kernel(tok_ref,      # SMEM (B*7,) int32 token ids (scalar prefetch)
                emb_hbm,      # ANY/HBM (ntoken, ninp) f32  -- gather source
                emb_tile,     # VMEM (tile_n, ninp) bf16    -- tied output-weight tile
                w1_ref,       # VMEM (nhid, 7*ninp) bf16    -- native PyTorch layout
                b1_ref,       # VMEM (1, nhid) f32
                b2_ref,       # VMEM (1, tile_n) f32        -- bias tile
                out_ref,      # VMEM (B, ntoken) f32        -- resident output block
                emb_x,        # VMEM scratch (B, 7*ninp) f32 -- gathered context
                h_bf16,       # VMEM scratch (B, nhid) bf16  -- tanh(h), cast once
                m_scr,        # VMEM scratch (B, 1) f32      -- running row max
                l_scr,        # VMEM scratch (B, 1) f32      -- running sum of exp
                sem,          # DMA semaphore array (1,)
                *, batch, ctx, ninp, tile_n, ntiles):
    j = pl.program_id(0)

    # ---- prologue (first vocab tile only): fused gather + first layer -------
    @pl.when(j == 0)
    def _prologue():
        # DMA each of the batch*ctx embedding rows straight from the HBM table
        # into the (B, 7*ninp) VMEM scratch.  Destination offsets are static
        # and lane-aligned (ninp % 128 == 0); all copies share one semaphore
        # (start all, then wait all).
        copies = []
        for b in range(batch):
            for t in range(ctx):
                tok = tok_ref[b * ctx + t]
                cp = pltpu.make_async_copy(
                    emb_hbm.at[pl.ds(tok, 1), :],
                    emb_x.at[pl.ds(b, 1), pl.ds(t * ninp, ninp)],
                    sem.at[0])
                cp.start()
                copies.append(cp)
        for cp in copies:
            cp.wait()

        # h = tanh(embeds @ W1^T + b1): contract the 7*ninp axis of both
        # operands (no wrapper-side transpose of W1), bf16 x bf16 -> f32 acc.
        # Cast to bf16 ONCE here; every vocab tile reuses h_bf16 as its LHS.
        h = lax.dot_general(
            emb_x[...].astype(jnp.bfloat16), w1_ref[...],
            dimension_numbers=(((1,), (1,)), ((), ())),
            preferred_element_type=jnp.float32)
        h_bf16[...] = jnp.tanh(h + b1_ref[...]).astype(jnp.bfloat16)

        # Online-softmax state.
        m_scr[...] = jnp.full_like(m_scr, -jnp.inf)
        l_scr[...] = jnp.zeros_like(l_scr)

    # ---- per-tile tied-weight projection (runs every grid step) -------------
    #   logits[:, j*T:(j+1)*T] = h @ emb_w[j*T:(j+1)*T, :]^T + b2[j*T:(j+1)*T]
    logits = lax.dot_general(
        h_bf16[...], emb_tile[...],
        dimension_numbers=(((1,), (1,)), ((), ())),
        preferred_element_type=jnp.float32) + b2_ref[...]

    # Write the biased logits straight into the resident output block
    # (128-aligned, lane-dense dynamic column slice).
    col = pl.multiple_of(j * tile_n, 128)
    out_ref[:, pl.ds(col, tile_n)] = logits

    # Flash-softmax recurrence: running max / running sum-of-exp per row.
    m_prev = m_scr[...]
    m_new = jnp.maximum(m_prev, jnp.max(logits, axis=1, keepdims=True))
    l_scr[...] = (l_scr[...] * jnp.exp(m_prev - m_new)
                  + jnp.sum(jnp.exp(logits - m_new), axis=1, keepdims=True))
    m_scr[...] = m_new

    # ---- epilogue (last vocab tile): in-place log_softmax fix-up -------------
    @pl.when(j == ntiles - 1)
    def _epilogue():
        lse = m_scr[...] + jnp.log(l_scr[...])           # (B, 1) f32

        def body(t, carry):
            c = pl.multiple_of(t * tile_n, 128)
            out_ref[:, pl.ds(c, tile_n)] = out_ref[:, pl.ds(c, tile_n)] - lse
            return carry

        lax.fori_loop(0, ntiles, body, 0)


def fnn_forward(tokens, params, *, tile_n=512, single_buffer_weights=False):
    """Fused FNNModelSharing forward.

    tokens: (7,) int32 (single context, exactly the PyTorch module's forward)
            or (B, 7) int32 (batched contexts; B in the 64-256 range amortizes
            the tied-weight stream at real vocab sizes).
    tile_n: vocab tile width; keep >= 256 on v6e/v7x, sweep 512-2048.
    single_buffer_weights: single-buffer the grid-invariant W1/b1 blocks
            (useful at large nhid on v7x's smaller VMEM).
    Returns (1, ntoken) / (B, ntoken) float32 log-probabilities.
    """
    emb_f32 = params["emb_f32"]
    emb_bf16 = params["emb_bf16"]
    w1, b1, b2 = params["w1"], params["b1"], params["b2"]

    ntoken, ninp = emb_bf16.shape
    nhid, ctx_ninp = w1.shape
    ctx = ctx_ninp // ninp
    assert nhid == ninp, "weight tying requires nhid == ninp"
    assert ctx_ninp == ctx * ninp

    tokens = jnp.asarray(tokens, jnp.int32)
    if tokens.ndim == 1:
        tokens = tokens[None, :]
    batch = tokens.shape[0]
    assert tokens.shape[1] == ctx, f"forward expects {ctx} token ids per context"
    # Clamp: token ids become DMA source row indices into the HBM table.
    tok_flat = jnp.clip(tokens.reshape(-1), 0, ntoken - 1)

    tile_n = min(tile_n, ntoken)
    assert ntoken % tile_n == 0, "ntoken must be a multiple of tile_n"
    ntiles = ntoken // tile_n

    kernel = functools.partial(
        _fnn_kernel,
        batch=batch, ctx=ctx, ninp=ninp, tile_n=tile_n, ntiles=ntiles)

    # Grid-invariant weights: optionally single-buffered (fetched once anyway).
    w1_kwargs = {}
    b1_kwargs = {}
    if single_buffer_weights:
        w1_kwargs["pipeline_mode"] = pl.Buffered(1)
        b1_kwargs["pipeline_mode"] = pl.Buffered(1)

    grid_spec = pltpu.PrefetchScalarGridSpec(
        num_scalar_prefetch=1,            # token ids -> SMEM
        grid=(ntiles,),                   # stream the tied weight over vocab tiles
        in_specs=[
            # Full f32 embedding table left in HBM; rows are DMA-gathered in-kernel.
            pl.BlockSpec(memory_space=pl.ANY),
            # Tied output-weight tile (vocab axis tiled, double-buffered by Pallas).
            pl.BlockSpec((tile_n, ninp), lambda j, toks: (j, 0)),
            # W1 / b1: constant block index -> fetched once, resident in VMEM.
            pl.BlockSpec((nhid, ctx_ninp), lambda j, toks: (0, 0), **w1_kwargs),
            pl.BlockSpec((1, nhid), lambda j, toks: (0, 0), **b1_kwargs),
            # b2 tile for the current vocab tile.
            pl.BlockSpec((1, tile_n), lambda j, toks: (0, j)),
        ],
        # Output stays resident across the vocab-tile axis; each tile writes its
        # columns directly, the epilogue normalizes in place.
        out_specs=pl.BlockSpec((batch, ntoken), lambda j, toks: (0, 0)),
        scratch_shapes=[
            pltpu.VMEM((batch, ctx_ninp), jnp.float32),  # gathered embeddings
            pltpu.VMEM((batch, nhid), jnp.bfloat16),     # h = tanh(...), bf16 staged once
            pltpu.VMEM((batch, 1), jnp.float32),         # running row max
            pltpu.VMEM((batch, 1), jnp.float32),         # running sum of exp
            pltpu.SemaphoreType.DMA((1,)),               # gather DMA semaphore
        ],
    )

    # Explicit scoped-VMEM budget from the buffer accounting (x2 headroom, never
    # below 32 MiB) so large tile_n stays usable against v7x's default limit.
    vmem_need = (
        2 * tile_n * ninp * 2            # emb_tile, double-buffered, bf16
        + 2 * nhid * ctx_ninp * 2        # W1 (x2 unless single_buffer_weights)
        + 2 * nhid * 4 + 2 * tile_n * 4  # b1, b2 blocks
        + batch * ntoken * 4             # resident output block
        + batch * ctx_ninp * 4           # emb_x scratch
        + batch * nhid * 2 + 2 * batch * 4
    )
    vmem_limit = int(min(100 * 1024 * 1024, max(32 * 1024 * 1024, 2 * vmem_need)))

    cost = pl.CostEstimate(
        flops=2 * batch * (ctx_ninp * nhid + nhid * ntoken),
        transcendentals=batch * (nhid + ntoken),
        bytes_accessed=int(emb_bf16.size * emb_bf16.dtype.itemsize
                           + w1.size * w1.dtype.itemsize
                           + batch * ntoken * 4),
    )

    return pl.pallas_call(
        kernel,
        grid_spec=grid_spec,
        out_shape=jax.ShapeDtypeStruct((batch, ntoken), jnp.float32),
        compiler_params=pltpu.CompilerParams(
            # The vocab axis carries state (h, running max/lse, resident output),
            # so it runs sequentially on one TensorCore.  A v7x two-core split
            # would need a two-pass max/lse combine; not worth it at these sizes.
            dimension_semantics=("arbitrary",),
            vmem_limit_bytes=vmem_limit),
        cost_estimate=cost,
    )(tok_flat, emb_f32, emb_bf16, w1, b1, b2)


def reference_forward(tokens, emb_w, w1, b1, b2):
    """Pure-JAX f32 reference matching the PyTorch module's forward."""
    tokens = jnp.asarray(tokens, jnp.int32)
    if tokens.ndim == 1:
        tokens = tokens[None, :]
    embeds = emb_w[tokens].reshape(tokens.shape[0], -1)    # (B, 7*ninp)
    h = jnp.tanh(embeds @ w1.T + b1)                       # (B, nhid)
    logits = h @ emb_w.T + b2                              # tied weight
    return jax.nn.log_softmax(logits, axis=-1)


if __name__ == "__main__":
    # Lane-friendly toy sizes: ninp, nhid, 7*ninp and ntoken are multiples of 128.
    # ntoken=1024 with tile_n=512 exercises the multi-tile online-softmax path.
    ntoken, ninp = 1024, 128
    nhid = ninp                  # required by the weight tying in the module
    ctx = 7                      # forward embeds exactly 7 tokens
    batch = 8                    # batched contexts (demo; use 64-256 in production)

    key = jax.random.PRNGKey(0)
    k_emb, k_w1, k_b1, k_b2, k_tok = jax.random.split(key, 5)

    # Tied embedding / linear2 weight: uniform(-0.1, 0.1) as in init_weights().
    emb_w = jax.random.uniform(k_emb, (ntoken, ninp), jnp.float32, -0.1, 0.1)
    # linear: PyTorch default init uniform(-1/sqrt(fan_in), 1/sqrt(fan_in)).
    bound1 = 1.0 / (ctx * ninp) ** 0.5
    w1 = jax.random.uniform(k_w1, (nhid, ctx * ninp), jnp.float32, -bound1, bound1)
    b1 = jax.random.uniform(k_b1, (nhid,), jnp.float32, -bound1, bound1)
    # linear2 bias (weight itself is tied to the embedding table).
    bound2 = 1.0 / nhid ** 0.5
    b2 = jax.random.uniform(k_b2, (ntoken,), jnp.float32, -bound2, bound2)

    params = prepare_params(emb_w, w1, b1, b2)   # one-time bf16 prep, no transposes

    # 1) Single 7-token context -- exact semantics of FNNModelSharing.forward.
    tokens1 = jax.random.randint(k_tok, (ctx,), 0, ntoken, dtype=jnp.int32)
    out1 = jax.block_until_ready(fnn_forward(tokens1, params))
    ref1 = reference_forward(tokens1, emb_w, w1, b1, b2)
    assert out1.shape == (1, ntoken)
    err1 = float(jnp.max(jnp.abs(out1 - ref1)))
    assert jnp.allclose(out1, ref1, rtol=1e-3, atol=5e-3), f"max err {err1}"

    # 2) Batched contexts -- amortizes the tied-weight stream / fills MXU rows.
    tokens_b = jax.random.randint(k_tok, (batch, ctx), 0, ntoken, dtype=jnp.int32)
    out_b = jax.block_until_ready(fnn_forward(tokens_b, params))
    ref_b = reference_forward(tokens_b, emb_w, w1, b1, b2)
    assert out_b.shape == (batch, ntoken)
    err_b = float(jnp.max(jnp.abs(out_b - ref_b)))
    assert jnp.allclose(out_b, ref_b, rtol=1e-3, atol=5e-3), f"max err {err_b}"
    assert jnp.allclose(jnp.sum(jnp.exp(out_b), axis=-1), 1.0, atol=1e-3)

    print("KERNEL_OK")
</pallas_src>

<mosaic_0001>
module attributes {stable_mosaic.version = 11 : i64} {
  func.func @_fnn_kernel(%arg0: i32, %arg1: memref<7xi32, #tpu.memory_space<smem>>, %arg2: memref<1024x128xf32, #tpu.memory_space<any>>, %arg3: memref<512x128xbf16, #tpu.memory_space<vmem>>, %arg4: memref<128x896xbf16, #tpu.memory_space<vmem>>, %arg5: memref<1x128xf32, #tpu.memory_space<vmem>>, %arg6: memref<1x512xf32, #tpu.memory_space<vmem>>, %arg7: memref<1x1024xf32, #tpu.memory_space<vmem>>, %arg8: memref<1x896xf32, #tpu.memory_space<vmem>>, %arg9: memref<1x128xbf16, #tpu.memory_space<vmem>>, %arg10: memref<1x1xf32, #tpu.memory_space<vmem>>, %arg11: memref<1x1xf32, #tpu.memory_space<vmem>>, %arg12: memref<1x!tpu.dma_semaphore, #tpu.memory_space<semaphore_mem>>) attributes {dimension_semantics = [#tpu.dimension_semantics<arbitrary>], iteration_bounds = array<i64: 2>, scalar_prefetch = 1 : i64, scratch_operands = 5 : i64, tpu.core_type = #tpu.core_type<tc>, window_params = [{}, {transform_indices = @transform_1, window_bounds = array<i64: 512, 128>}, {pipeline_mode = #tpu.pipeline_mode<synchronous>, transform_indices = @transform_2, window_bounds = array<i64: 128, 896>}, {pipeline_mode = #tpu.pipeline_mode<synchronous>, transform_indices = @transform_3, window_bounds = array<i64: 1, 128>}, {transform_indices = @transform_4, window_bounds = array<i64: 1, 512>}, {pipeline_mode = #tpu.pipeline_mode<synchronous>, transform_indices = @transform_5, window_bounds = array<i64: 1, 1024>}]} {
    %c0_i32 = arith.constant 0 : i32
    %0 = arith.cmpi eq, %arg0, %c0_i32 : i32
    %1 = arith.extui %0 : i1 to i32
    %c0_i32_0 = arith.constant 0 : i32
    %2 = arith.cmpi ne, %1, %c0_i32_0 : i32
    scf.if %2 {
      %c0_18 = arith.constant 0 : index
      %31 = memref.load %arg1[%c0_18] : memref<7xi32, #tpu.memory_space<smem>>
      %c0_i32_19 = arith.constant 0 : i32
      %c0_i32_20 = arith.constant 0 : i32
      %32 = tpu.memref_slice %arg2[%31, %c0_i32_20] : memref<1024x128xf32, #tpu.memory_space<any>> -> memref<1x128xf32, #tpu.memory_space<any>>
      %c0_i32_21 = arith.constant 0 : i32
      %c0_i32_22 = arith.constant 0 : i32
      %33 = tpu.memref_slice %arg8[%c0_i32_21, %c0_i32_22] : memref<1x896xf32, #tpu.memory_space<vmem>> -> memref<1x128xf32, #tpu.memory_space<vmem>>
      %34 = tpu.memref_slice %arg12[%c0_i32_19] : memref<1x!tpu.dma_semaphore, #tpu.memory_space<semaphore_mem>> -> memref<1x!tpu.dma_semaphore, #tpu.memory_space<semaphore_mem>>
      %35 = tpu.memref_squeeze %34 : memref<1x!tpu.dma_semaphore, #tpu.memory_space<semaphore_mem>> -> memref<!tpu.dma_semaphore, #tpu.memory_space<semaphore_mem>>
      tpu.enqueue_dma source(%32 : memref<1x128xf32, #tpu.memory_space<any>>) target(%33 : memref<1x128xf32, #tpu.memory_space<vmem>>) target_semaphore(%35 : memref<!tpu.dma_semaphore, #tpu.memory_space<semaphore_mem>>)
      %c1 = arith.constant 1 : index
      %36 = memref.load %arg1[%c1] : memref<7xi32, #tpu.memory_space<smem>>
      %c0_i32_23 = arith.constant 0 : i32
      %c0_i32_24 = arith.constant 0 : i32
      %37 = tpu.memref_slice %arg2[%36, %c0_i32_24] : memref<1024x128xf32, #tpu.memory_space<any>> -> memref<1x128xf32, #tpu.memory_space<any>>
      %c0_i32_25 = arith.constant 0 : i32
      %c128_i32 = arith.constant 128 : i32
      %38 = tpu.memref_slice %arg8[%c0_i32_25, %c128_i32] : memref<1x896xf32, #tpu.memory_space<vmem>> -> memref<1x128xf32, #tpu.memory_space<vmem>>
      %39 = tpu.memref_slice %arg12[%c0_i32_23] : memref<1x!tpu.dma_semaphore, #tpu.memory_space<semaphore_mem>> -> memref<1x!tpu.dma_semaphore, #tpu.memory_space<semaphore_mem>>
      %40 = tpu.memref_squeeze %39 : memref<1x!tpu.dma_semaphore, #tpu.memory_space<semaphore_mem>> -> memref<!tpu.dma_semaphore, #tpu.memory_space<semaphore_mem>>
      tpu.enqueue_dma source(%37 : memref<1x128xf32, #tpu.memory_space<any>>) target(%38 : memref<1x128xf32, #tpu.memory_space<vmem>>) target_semaphore(%40 : memref<!tpu.dma_semaphore, #tpu.memory_space<semaphore_mem>>)
      %c2 = arith.constant 2 : index
      %41 = memref.load %arg1[%c2] : memref<7xi32, #tpu.memory_space<smem>>
      %c0_i32_26 = arith.constant 0 : i32
      %c0_i32_27 = arith.constant 0 : i32
      %42 = tpu.memref_slice %arg2[%41, %c0_i32_27] : memref<1024x128xf32, #tpu.memory_space<any>> -> memref<1x128xf32, #tpu.memory_space<any>>
      %c0_i32_28 = arith.constant 0 : i32
      %c256_i32 = arith.constant 256 : i32
      %43 = tpu.memref_slice %arg8[%c0_i32_28, %c256_i32] : memref<1x896xf32, #tpu.memory_space<vmem>> -> memref<1x128xf32, #tpu.memory_space<vmem>>
      %44 = tpu.memref_slice %arg12[%c0_i32_26] : memref<1x!tpu.dma_semaphore, #tpu.memory_space<semaphore_mem>> -> memref<1x!tpu.dma_semaphore, #tpu.memory_space<semaphore_mem>>
      %45 = tpu.memref_squeeze %44 : memref<1x!tpu.dma_semaphore, #tpu.memory_space<semaphore_mem>> -> memref<!tpu.dma_semaphore, #tpu.memory_space<semaphore_mem>>
      tpu.enqueue_dma source(%42 : memref<1x128xf32, #tpu.memory_space<any>>) target(%43 : memref<1x128xf32, #tpu.memory_space<vmem>>) target_semaphore(%45 : memref<!tpu.dma_semaphore, #tpu.memory_space<semaphore_mem>>)
      %c3 = arith.constant 3 : index
      %46 = memref.load %arg1[%c3] : memref<7xi32, #tpu.memory_space<smem>>
      %c0_i32_29 = arith.constant 0 : i32
      %c0_i32_30 = arith.constant 0 : i32
      %47 = tpu.memref_slice %arg2[%46, %c0_i32_30] : memref<1024x128xf32, #tpu.memory_space<any>> -> memref<1x128xf32, #tpu.memory_space<any>>
      %c0_i32_31 = arith.constant 0 : i32
      %c384_i32 = arith.constant 384 : i32
      %48 = tpu.memref_slice %arg8[%c0_i32_31, %c384_i32] : memref<1x896xf32, #tpu.memory_space<vmem>> -> memref<1x128xf32, #tpu.memory_space<vmem>>
      %49 = tpu.memref_slice %arg12[%c0_i32_29] : memref<1x!tpu.dma_semaphore, #tpu.memory_space<semaphore_mem>> -> memref<1x!tpu.dma_semaphore, #tpu.memory_space<semaphore_mem>>
      %50 = tpu.memref_squeeze %49 : memref<1x!tpu.dma_semaphore, #tpu.memory_space<semaphore_mem>> -> memref<!tpu.dma_semaphore, #tpu.memory_space<semaphore_mem>>
      tpu.enqueue_dma source(%47 : memref<1x128xf32, #tpu.memory_space<any>>) target(%48 : memref<1x128xf32, #tpu.memory_space<vmem>>) target_semaphore(%50 : memref<!tpu.dma_semaphore, #tpu.memory_space<semaphore_mem>>)
      %c4 = arith.constant 4 : index
      %51 = memref.load %arg1[%c4] : memref<7xi32, #tpu.memory_space<smem>>
      %c0_i32_32 = arith.constant 0 : i32
      %c0_i32_33 = arith.constant 0 : i32
      %52 = tpu.memref_slice %arg2[%51, %c0_i32_33] : memref<1024x128xf32, #tpu.memory_space<any>> -> memref<1x128xf32, #tpu.memory_space<any>>
      %c0_i32_34 = arith.constant 0 : i32
      %c512_i32_35 = arith.constant 512 : i32
      %53 = tpu.memref_slice %arg8[%c0_i32_34, %c512_i32_35] : memref<1x896xf32, #tpu.memory_space<vmem>> -> memref<1x128xf32, #tpu.memory_space<vmem>>
      %54 = tpu.memref_slice %arg12[%c0_i32_32] : memref<1x!tpu.dma_semaphore, #tpu.memory_space<semaphore_mem>> -> memref<1x!tpu.dma_semaphore, #tpu.memory_space<semaphore_mem>>
      %55 = tpu.memref_squeeze %54 : memref<1x!tpu.dma_semaphore, #tpu.memory_space<semaphore_mem>> -> memref<!tpu.dma_semaphore, #tpu.memory_space<semaphore_mem>>
      tpu.enqueue_dma source(%52 : memref<1x128xf32, #tpu.memory_space<any>>) target(%53 : memref<1x128xf32, #tpu.memory_space<vmem>>) target_semaphore(%55 : memref<!tpu.dma_semaphore, #tpu.memory_space<semaphore_mem>>)
      %c5 = arith.constant 5 : index
      %56 = memref.load %arg1[%c5] : memref<7xi32, #tpu.memory_space<smem>>
      %c0_i32_36 = arith.constant 0 : i32
      %c0_i32_37 = arith.constant 0 : i32
      %57 = tpu.memref_slice %arg2[%56, %c0_i32_37] : memref<1024x128xf32, #tpu.memory_space<any>> -> memref<1x128xf32, #tpu.memory_space<any>>
      %c0_i32_38 = arith.constant 0 : i32
      %c640_i32 = arith.constant 640 : i32
      %58 = tpu.memref_slice %arg8[%c0_i32_38, %c640_i32] : memref<1x896xf32, #tpu.memory_space<vmem>> -> memref<1x128xf32, #tpu.memory_space<vmem>>
      %59 = tpu.memref_slice %arg12[%c0_i32_36] : memref<1x!tpu.dma_semaphore, #tpu.memory_space<semaphore_mem>> -> memref<1x!tpu.dma_semaphore, #tpu.memory_space<semaphore_mem>>
      %60 = tpu.memref_squeeze %59 : memref<1x!tpu.dma_semaphore, #tpu.memory_space<semaphore_mem>> -> memref<!tpu.dma_semaphore, #tpu.memory_space<semaphore_mem>>
      tpu.enqueue_dma source(%57 : memref<1x128xf32, #tpu.memory_space<any>>) target(%58 : memref<1x128xf32, #tpu.memory_space<vmem>>) target_semaphore(%60 : memref<!tpu.dma_semaphore, #tpu.memory_space<semaphore_mem>>)
      %c6 = arith.constant 6 : index
      %61 = memref.load %arg1[%c6] : memref<7xi32, #tpu.memory_space<smem>>
      %c0_i32_39 = arith.constant 0 : i32
      %c0_i32_40 = arith.constant 0 : i32
      %62 = tpu.memref_slice %arg2[%61, %c0_i32_40] : memref<1024x128xf32, #tpu.memory_space<any>> -> memref<1x128xf32, #tpu.memory_space<any>>
      %c0_i32_41 = arith.constant 0 : i32
      %c768_i32 = arith.constant 768 : i32
      %63 = tpu.memref_slice %arg8[%c0_i32_41, %c768_i32] : memref<1x896xf32, #tpu.memory_space<vmem>> -> memref<1x128xf32, #tpu.memory_space<vmem>>
      %64 = tpu.memref_slice %arg12[%c0_i32_39] : memref<1x!tpu.dma_semaphore, #tpu.memory_space<semaphore_mem>> -> memref<1x!tpu.dma_semaphore, #tpu.memory_space<semaphore_mem>>
      %65 = tpu.memref_squeeze %64 : memref<1x!tpu.dma_semaphore, #tpu.memory_space<semaphore_mem>> -> memref<!tpu.dma_semaphore, #tpu.memory_space<semaphore_mem>>
      tpu.enqueue_dma source(%62 : memref<1x128xf32, #tpu.memory_space<any>>) target(%63 : memref<1x128xf32, #tpu.memory_space<vmem>>) target_semaphore(%65 : memref<!tpu.dma_semaphore, #tpu.memory_space<semaphore_mem>>)
      %c0_i32_42 = arith.constant 0 : i32
      %c0_i32_43 = arith.constant 0 : i32
      %66 = tpu.memref_slice %arg2[%31, %c0_i32_43] : memref<1024x128xf32, #tpu.memory_space<any>> -> memref<1x128xf32, #tpu.memory_space<any>>
      %c0_i32_44 = arith.constant 0 : i32
      %c0_i32_45 = arith.constant 0 : i32
      %67 = tpu.memref_slice %arg8[%c0_i32_44, %c0_i32_45] : memref<1x896xf32, #tpu.memory_space<vmem>> -> memref<1x128xf32, #tpu.memory_space<vmem>>
      %68 = tpu.memref_slice %arg12[%c0_i32_42] : memref<1x!tpu.dma_semaphore, #tpu.memory_space<semaphore_mem>> -> memref<1x!tpu.dma_semaphore, #tpu.memory_space<semaphore_mem>>
      %69 = tpu.memref_squeeze %68 : memref<1x!tpu.dma_semaphore, #tpu.memory_space<semaphore_mem>> -> memref<!tpu.dma_semaphore, #tpu.memory_space<semaphore_mem>>
      tpu.wait_dma2 semaphore(%69 : memref<!tpu.dma_semaphore, #tpu.memory_space<semaphore_mem>>) src(%66 : memref<1x128xf32, #tpu.memory_space<any>>) dst(%67 : memref<1x128xf32, #tpu.memory_space<vmem>>)
      %c0_i32_46 = arith.constant 0 : i32
      %c0_i32_47 = arith.constant 0 : i32
      %70 = tpu.memref_slice %arg2[%36, %c0_i32_47] : memref<1024x128xf32, #tpu.memory_space<any>> -> memref<1x128xf32, #tpu.memory_space<any>>
      %c0_i32_48 = arith.constant 0 : i32
      %c128_i32_49 = arith.constant 128 : i32
      %71 = tpu.memref_slice %arg8[%c0_i32_48, %c128_i32_49] : memref<1x896xf32, #tpu.memory_space<vmem>> -> memref<1x128xf32, #tpu.memory_space<vmem>>
      %72 = tpu.memref_slice %arg12[%c0_i32_46] : memref<1x!tpu.dma_semaphore, #tpu.memory_space<semaphore_mem>> -> memref<1x!tpu.dma_semaphore, #tpu.memory_space<semaphore_mem>>
      %73 = tpu.memref_squeeze %72 : memref<1x!tpu.dma_semaphore, #tpu.memory_space<semaphore_mem>> -> memref<!tpu.dma_semaphore, #tpu.memory_space<semaphore_mem>>
      tpu.wait_dma2 semaphore(%73 : memref<!tpu.dma_semaphore, #tpu.memory_space<semaphore_mem>>) src(%70 : memref<1x128xf32, #tpu.memory_space<any>>) dst(%71 : memref<1x128xf32, #tpu.memory_space<vmem>>)
      %c0_i32_50 = arith.constant 0 : i32
      %c0_i32_51 = arith.constant 0 : i32
      %74 = tpu.memref_slice %arg2[%41, %c0_i32_51] : memref<1024x128xf32, #tpu.memory_space<any>> -> memref<1x128xf32, #tpu.memory_space<any>>
      %c0_i32_52 = arith.constant 0 : i32
      %c256_i32_53 = arith.constant 256 : i32
      %75 = tpu.memref_slice %arg8[%c0_i32_52, %c256_i32_53] : memref<1x896xf32, #tpu.memory_space<vmem>> -> memref<1x128xf32, #tpu.memory_space<vmem>>
      %76 = tpu.memref_slice %arg12[%c0_i32_50] : memref<1x!tpu.dma_semaphore, #tpu.memory_space<semaphore_mem>> -> memref<1x!tpu.dma_semaphore, #tpu.memory_space<semaphore_mem>>
      %77 = tpu.memref_squeeze %76 : memref<1x!tpu.dma_semaphore, #tpu.memory_space<semaphore_mem>> -> memref<!tpu.dma_semaphore, #tpu.memory_space<semaphore_mem>>
      tpu.wait_dma2 semaphore(%77 : memref<!tpu.dma_semaphore, #tpu.memory_space<semaphore_mem>>) src(%74 : memref<1x128xf32, #tpu.memory_space<any>>) dst(%75 : memref<1x128xf32, #tpu.memory_space<vmem>>)
      %c0_i32_54 = arith.constant 0 : i32
      %c0_i32_55 = arith.constant 0 : i32
      %78 = tpu.memref_slice %arg2[%46, %c0_i32_55] : memref<1024x128xf32, #tpu.memory_space<any>> -> memref<1x128xf32, #tpu.memory_space<any>>
      %c0_i32_56 = arith.constant 0 : i32
      %c384_i32_57 = arith.constant 384 : i32
      %79 = tpu.memref_slice %arg8[%c0_i32_56, %c384_i32_57] : memref<1x896xf32, #tpu.memory_space<vmem>> -> memref<1x128xf32, #tpu.memory_space<vmem>>
      %80 = tpu.memref_slice %arg12[%c0_i32_54] : memref<1x!tpu.dma_semaphore, #tpu.memory_space<semaphore_mem>> -> memref<1x!tpu.dma_semaphore, #tpu.memory_space<semaphore_mem>>
      %81 = tpu.memref_squeeze %80 : memref<1x!tpu.dma_semaphore, #tpu.memory_space<semaphore_mem>> -> memref<!tpu.dma_semaphore, #tpu.memory_space<semaphore_mem>>
      tpu.wait_dma2 semaphore(%81 : memref<!tpu.dma_semaphore, #tpu.memory_space<semaphore_mem>>) src(%78 : memref<1x128xf32, #tpu.memory_space<any>>) dst(%79 : memref<1x128xf32, #tpu.memory_space<vmem>>)
      %c0_i32_58 = arith.constant 0 : i32
      %c0_i32_59 = arith.constant 0 : i32
      %82 = tpu.memref_slice %arg2[%51, %c0_i32_59] : memref<1024x128xf32, #tpu.memory_space<any>> -> memref<1x128xf32, #tpu.memory_space<any>>
      %c0_i32_60 = arith.constant 0 : i32
      %c512_i32_61 = arith.constant 512 : i32
      %83 = tpu.memref_slice %arg8[%c0_i32_60, %c512_i32_61] : memref<1x896xf32, #tpu.memory_space<vmem>> -> memref<1x128xf32, #tpu.memory_space<vmem>>
      %84 = tpu.memref_slice %arg12[%c0_i32_58] : memref<1x!tpu.dma_semaphore, #tpu.memory_space<semaphore_mem>> -> memref<1x!tpu.dma_semaphore, #tpu.memory_space<semaphore_mem>>
      %85 = tpu.memref_squeeze %84 : memref<1x!tpu.dma_semaphore, #tpu.memory_space<semaphore_mem>> -> memref<!tpu.dma_semaphore, #tpu.memory_space<semaphore_mem>>
      tpu.wait_dma2 semaphore(%85 : memref<!tpu.dma_semaphore, #tpu.memory_space<semaphore_mem>>) src(%82 : memref<1x128xf32, #tpu.memory_space<any>>) dst(%83 : memref<1x128xf32, #tpu.memory_space<vmem>>)
      %c0_i32_62 = arith.constant 0 : i32
      %c0_i32_63 = arith.constant 0 : i32
      %86 = tpu.memref_slice %arg2[%56, %c0_i32_63] : memref<1024x128xf32, #tpu.memory_space<any>> -> memref<1x128xf32, #tpu.memory_space<any>>
      %c0_i32_64 = arith.constant 0 : i32
      %c640_i32_65 = arith.constant 640 : i32
      %87 = tpu.memref_slice %arg8[%c0_i32_64, %c640_i32_65] : memref<1x896xf32, #tpu.memory_space<vmem>> -> memref<1x128xf32, #tpu.memory_space<vmem>>
      %88 = tpu.memref_slice %arg12[%c0_i32_62] : memref<1x!tpu.dma_semaphore, #tpu.memory_space<semaphore_mem>> -> memref<1x!tpu.dma_semaphore, #tpu.memory_space<semaphore_mem>>
      %89 = tpu.memref_squeeze %88 : memref<1x!tpu.dma_semaphore, #tpu.memory_space<semaphore_mem>> -> memref<!tpu.dma_semaphore, #tpu.memory_space<semaphore_mem>>
      tpu.wait_dma2 semaphore(%89 : memref<!tpu.dma_semaphore, #tpu.memory_space<semaphore_mem>>) src(%86 : memref<1x128xf32, #tpu.memory_space<any>>) dst(%87 : memref<1x128xf32, #tpu.memory_space<vmem>>)
      %c0_i32_66 = arith.constant 0 : i32
      %c0_i32_67 = arith.constant 0 : i32
      %90 = tpu.memref_slice %arg2[%61, %c0_i32_67] : memref<1024x128xf32, #tpu.memory_space<any>> -> memref<1x128xf32, #tpu.memory_space<any>>
      %c0_i32_68 = arith.constant 0 : i32
      %c768_i32_69 = arith.constant 768 : i32
      %91 = tpu.memref_slice %arg8[%c0_i32_68, %c768_i32_69] : memref<1x896xf32, #tpu.memory_space<vmem>> -> memref<1x128xf32, #tpu.memory_space<vmem>>
      %92 = tpu.memref_slice %arg12[%c0_i32_66] : memref<1x!tpu.dma_semaphore, #tpu.memory_space<semaphore_mem>> -> memref<1x!tpu.dma_semaphore, #tpu.memory_space<semaphore_mem>>
      %93 = tpu.memref_squeeze %92 : memref<1x!tpu.dma_semaphore, #tpu.memory_space<semaphore_mem>> -> memref<!tpu.dma_semaphore, #tpu.memory_space<semaphore_mem>>
      tpu.wait_dma2 semaphore(%93 : memref<!tpu.dma_semaphore, #tpu.memory_space<semaphore_mem>>) src(%90 : memref<1x128xf32, #tpu.memory_space<any>>) dst(%91 : memref<1x128xf32, #tpu.memory_space<vmem>>)
      %c0_70 = arith.constant 0 : index
      %c0_71 = arith.constant 0 : index
      %94 = vector.load %arg8[%c0_70, %c0_71] : memref<1x896xf32, #tpu.memory_space<vmem>>, vector<1x896xf32>
      %95 = arith.truncf %94 : vector<1x896xf32> to vector<1x896xbf16>
      %c0_72 = arith.constant 0 : index
      %c0_73 = arith.constant 0 : index
      %96 = vector.load %arg4[%c0_72, %c0_73] : memref<128x896xbf16, #tpu.memory_space<vmem>>, vector<128x896xbf16>
      %cst_74 = arith.constant dense<0.000000e+00> : vector<1x128xf32>
      %97 = tpu.matmul %95, %96, %cst_74 {dimension_numbers = #tpu.dot_dimension_numbers<[1], [1], [0], [0], [0, 0, 1, 0], [], []>} : vector<1x896xbf16>, vector<128x896xbf16>, vector<1x128xf32> -> vector<1x128xf32>
      %c0_75 = arith.constant 0 : index
      %c0_76 = arith.constant 0 : index
      %98 = vector.load %arg5[%c0_75, %c0_76] : memref<1x128xf32, #tpu.memory_space<vmem>>, vector<1x128xf32>
      %99 = arith.addf %97, %98 : vector<1x128xf32>
      %100 = math.tanh %99 : vector<1x128xf32>
      %101 = arith.truncf %100 : vector<1x128xf32> to vector<1x128xbf16>
      %c0_77 = arith.constant 0 : index
      %c0_78 = arith.constant 0 : index
      %102 = vector.load %arg9[%c0_77, %c0_78] : memref<1x128xbf16, #tpu.memory_space<vmem>>, vector<1x128xbf16>
      tpu.vector_store %arg9[%c0_77, %c0_78], %101 {strides = array<i32>} : memref<1x128xbf16, #tpu.memory_space<vmem>>, vector<1x128xbf16>,
      %cst_79 = arith.constant 0xFF800000 : f32
      %103 = vector.broadcast %cst_79 : f32 to vector<1x1xf32>
      %c0_80 = arith.constant 0 : index
      %c0_81 = arith.constant 0 : index
      %104 = vector.load %arg10[%c0_80, %c0_81] : memref<1x1xf32, #tpu.memory_space<vmem>>, vector<1x1xf32>
      tpu.vector_store %arg10[%c0_80, %c0_81], %103 {strides = array<i32>} : memref<1x1xf32, #tpu.memory_space<vmem>>, vector<1x1xf32>,
      %cst_82 = arith.constant 0.000000e+00 : f32
      %105 = vector.broadcast %cst_82 : f32 to vector<1x1xf32>
      %c0_83 = arith.constant 0 : index
      %c0_84 = arith.constant 0 : index
      %106 = vector.load %arg11[%c0_83, %c0_84] : memref<1x1xf32, #tpu.memory_space<vmem>>, vector<1x1xf32>
      tpu.vector_store %arg11[%c0_83, %c0_84], %105 {strides = array<i32>} : memref<1x1xf32, #tpu.memory_space<vmem>>, vector<1x1xf32>,
    } else {
    }
    %c0 = arith.constant 0 : index
    %c0_1 = arith.constant 0 : index
    %3 = vector.load %arg9[%c0, %c0_1] : memref<1x128xbf16, #tpu.memory_space<vmem>>, vector<1x128xbf16>
    %c0_2 = arith.constant 0 : index
    %c0_3 = arith.constant 0 : index
    %4 = vector.load %arg3[%c0_2, %c0_3] : memref<512x128xbf16, #tpu.memory_space<vmem>>, vector<512x128xbf16>
    %cst = arith.constant dense<0.000000e+00> : vector<1x512xf32>
    %5 = tpu.matmul %3, %4, %cst {dimension_numbers = #tpu.dot_dimension_numbers<[1], [1], [0], [0], [0, 0, 1, 0], [], []>} : vector<1x128xbf16>, vector<512x128xbf16>, vector<1x512xf32> -> vector<1x512xf32>
    %c0_4 = arith.constant 0 : index
    %c0_5 = arith.constant 0 : index
    %6 = vector.load %arg6[%c0_4, %c0_5] : memref<1x512xf32, #tpu.memory_space<vmem>>, vector<1x512xf32>
    %7 = arith.addf %5, %6 : vector<1x512xf32>
    %c512_i32 = arith.constant 512 : i32
    %8 = arith.muli %arg0, %c512_i32 : i32
    %9 = tpu.assume_multiple %8, 128 : i32
    %c0_6 = arith.constant 0 : index
    %10 = arith.index_cast %9 : i32 to index
    %11 = vector.load %arg7[%c0_6, %10] : memref<1x1024xf32, #tpu.memory_space<vmem>>, vector<1x512xf32>
    tpu.vector_store %arg7[%c0_6, %10], %7 {strides = array<i32>} : memref<1x1024xf32, #tpu.memory_space<vmem>>, vector<1x512xf32>,
    %c0_7 = arith.constant 0 : index
    %c0_8 = arith.constant 0 : index
    %12 = vector.load %arg10[%c0_7, %c0_8] : memref<1x1xf32, #tpu.memory_space<vmem>>, vector<1x1xf32>
    %cst_9 = arith.constant dense<0xFF800000> : vector<1xf32>
    %13 = vector.multi_reduction <maximumf>, %7, %cst_9 [1] : vector<1x512xf32> to vector<1xf32>
    %14 = vector.shape_cast %13 : vector<1xf32> to vector<1x1xf32>
    %15 = arith.maximumf %12, %14 : vector<1x1xf32>
    %c0_10 = arith.constant 0 : index
    %c0_11 = arith.constant 0 : index
    %16 = vector.load %arg11[%c0_10, %c0_11] : memref<1x1xf32, #tpu.memory_space<vmem>>, vector<1x1xf32>
    %17 = arith.subf %12, %15 : vector<1x1xf32>
    %18 = math.exp %17 : vector<1x1xf32>
    %19 = arith.mulf %16, %18 : vector<1x1xf32>
    %20 = vector.broadcast %15 : vector<1x1xf32> to vector<1x512xf32>
    %21 = arith.subf %7, %20 : vector<1x512xf32>
    %22 = math.exp %21 : vector<1x512xf32>
    %cst_12 = arith.constant dense<0.000000e+00> : vector<1xf32>
    %23 = vector.multi_reduction <add>, %22, %cst_12 [1] : vector<1x512xf32> to vector<1xf32>
    %24 = vector.shape_cast %23 : vector<1xf32> to vector<1x1xf32>
    %25 = arith.addf %19, %24 : vector<1x1xf32>
    %c0_13 = arith.constant 0 : index
    %c0_14 = arith.constant 0 : index
    %26 = vector.load %arg11[%c0_13, %c0_14] : memref<1x1xf32, #tpu.memory_space<vmem>>, vector<1x1xf32>
    tpu.vector_store %arg11[%c0_13, %c0_14], %25 {strides = array<i32>} : memref<1x1xf32, #tpu.memory_space<vmem>>, vector<1x1xf32>,
    %c0_15 = arith.constant 0 : index
    %c0_16 = arith.constant 0 : index
    %27 = vector.load %arg10[%c0_15, %c0_16] : memref<1x1xf32, #tpu.memory_space<vmem>>, vector<1x1xf32>
    tpu.vector_store %arg10[%c0_15, %c0_16], %15 {strides = array<i32>} : memref<1x1xf32, #tpu.memory_space<vmem>>, vector<1x1xf32>,
    %c1_i32 = arith.constant 1 : i32
    %28 = arith.cmpi eq, %arg0, %c1_i32 : i32
    %29 = arith.extui %28 : i1 to i32
    %c0_i32_17 = arith.constant 0 : i32
    %30 = arith.cmpi ne, %29, %c0_i32_17 : i32
    scf.if %30 {
      %c0_18 = arith.constant 0 : index
      %c0_19 = arith.constant 0 : index
      %31 = vector.load %arg10[%c0_18, %c0_19] : memref<1x1xf32, #tpu.memory_space<vmem>>, vector<1x1xf32>
      %c0_20 = arith.constant 0 : index
      %c0_21 = arith.constant 0 : index
      %32 = vector.load %arg11[%c0_20, %c0_21] : memref<1x1xf32, #tpu.memory_space<vmem>>, vector<1x1xf32>
      %33 = math.log %32 : vector<1x1xf32>
      %34 = arith.addf %31, %33 : vector<1x1xf32>
      %c0_i32_22 = arith.constant 0 : i32
      %c2_i32 = arith.constant 2 : i32
      %35 = arith.addi %c0_i32_22, %c2_i32 : i32
      %c1_i32_23 = arith.constant 1 : i32
      scf.for %arg13 = %c0_i32_22 to %35 step %c1_i32_23  : i32 {
        %c512_i32_25 = arith.constant 512 : i32
        %36 = arith.muli %arg13, %c512_i32_25 : i32
        %37 = tpu.assume_multiple %36, 128 : i32
        %c0_26 = arith.constant 0 : index
        %38 = arith.index_cast %37 : i32 to index
        %39 = vector.load %arg7[%c0_26, %38] : memref<1x1024xf32, #tpu.memory_space<vmem>>, vector<1x512xf32>
        %40 = vector.broadcast %34 : vector<1x1xf32> to vector<1x512xf32>
        %41 = arith.subf %39, %40 : vector<1x512xf32>
        %c0_27 = arith.constant 0 : index
        %42 = arith.index_cast %37 : i32 to index
        %43 = vector.load %arg7[%c0_27, %42] : memref<1x1024xf32, #tpu.memory_space<vmem>>, vector<1x512xf32>
        tpu.vector_store %arg7[%c0_27, %42], %41 {strides = array<i32>} : memref<1x1024xf32, #tpu.memory_space<vmem>>, vector<1x512xf32>,
      }
      %c2_i32_24 = arith.constant 2 : i32
    } else {
    }
    return
  }
  func.func @transform_1(%arg0: i32, %arg1: memref<7xi32, #tpu.memory_space<smem>>) -> (i32, i32) {
    %c0_i32 = arith.constant 0 : i32
    %c0_i32_0 = arith.constant 0 : i32
    return %arg0, %c0_i32 : i32, i32
  }
  func.func @transform_2(%arg0: i32, %arg1: memref<7xi32, #tpu.memory_space<smem>>) -> (i32, i32) {
    %c0_i32 = arith.constant 0 : i32
    %c0_i32_0 = arith.constant 0 : i32
    %c0_i32_1 = arith.constant 0 : i32
    return %c0_i32, %c0_i32_0 : i32, i32
  }
  func.func @transform_3(%arg0: i32, %arg1: memref<7xi32, #tpu.memory_space<smem>>) -> (i32, i32) {
    %c0_i32 = arith.constant 0 : i32
    %c0_i32_0 = arith.constant 0 : i32
    %c0_i32_1 = arith.constant 0 : i32
    return %c0_i32, %c0_i32_0 : i32, i32
  }
  func.func @transform_4(%arg0: i32, %arg1: memref<7xi32, #tpu.memory_space<smem>>) -> (i32, i32) {
    %c0_i32 = arith.constant 0 : i32
    %c0_i32_0 = arith.constant 0 : i32
    return %c0_i32, %arg0 : i32, i32
  }
  func.func @transform_5(%arg0: i32, %arg1: memref<7xi32, #tpu.memory_space<smem>>) -> (i32, i32) {
    %c0_i32 = arith.constant 0 : i32
    %c0_i32_0 = arith.constant 0 : i32
    %c0_i32_1 = arith.constant 0 : i32
    return %c0_i32, %c0_i32_0 : i32, i32
  }
}

</mosaic_0001>

<llo_original>
// kernel: tpu_custom_call.1
$region0: #{tpu_custom_call.1}
  #allocation0 [shape = 'u32[]', space=smem, size = 0x4, offset = 0x4, fixed_abs, tag = 'smem constant byte address 0x4 - core index']
  #allocation1 [shape = 'u32[72,128]{1,0:T(1,128)}', space=vmem, size = 0x9000, scoped, tag = 'internal scratch']
  #allocation2 [shape = 'f32[1,896]{1,0:T(1,128)}', space=vmem, size = 0xe00, scoped, tag = 'scratch operand']
  #allocation3 [shape = 'bf16[1,128]{1,0:T(2,128)(2,1)}', space=vmem, size = 0x200, scoped, tag = 'scratch operand']
  #allocation4 [shape = 'f32[1,1]{1,0:T(1,128)}', space=vmem, size = 0x200, scoped, tag = 'scratch operand']
  #allocation5 [shape = 'f32[1,1]{1,0:T(1,128)}', space=vmem, size = 0x200, scoped, tag = 'scratch operand']
  #allocation6 [shape = 's32[1]{0}', space=sflag, size = 0x4, scoped, tag = 'scratch operand']
  #allocation7 [shape = 's32[1]{0}', space=sflag, size = 0x4, scoped, tag = 'scoped memory for tpu_custom_call.1']
  #allocation8 [shape = 'u8[512]{0}', space=smem, size = 0x200, scoped, tag = 'prefetched SMEM operand 0']
  #allocation16 [shape = 's32[]', space=sflag, size = 0x4, offset = 0, fixed_abs, tag = 'sflag constant byte address 0x0 - dummy sync flag']
  #allocation17 [shape = 's32[]', space=sflag, size = 0x4, offset = 0, fixed_abs, tag = 'sflag constant byte address 0x0 - dummy sync flag']
  #allocation18 [shape = 'u32[]', space=smem, size = 0x4, offset = 0x44, fixed_abs, tag = 'smem constant byte address 0x44 - assertion arg 0']
  #allocation19 [shape = 'u32[]', space=smem, size = 0x4, offset = 0x48, fixed_abs, tag = 'smem constant byte address 0x48 - assertion arg 1']
  #allocation20 [shape = 's32[]', space=sflag, size = 0x4, offset = 0, fixed_abs, tag = 'sflag constant byte address 0x0 - dummy sync flag']
  #allocation21 [shape = 's32[]', space=sflag, size = 0x4, offset = 0, fixed_abs, tag = 'sflag constant byte address 0x0 - dummy sync flag']
  #allocation22 [shape = 's32[]', space=sflag, size = 0x4, offset = 0, fixed_abs, tag = 'sflag constant byte address 0x0 - dummy sync flag']
  #allocation23 [shape = 's32[]', space=sflag, size = 0x4, offset = 0, fixed_abs, tag = 'sflag constant byte address 0x0 - dummy sync flag']
  #allocation24 [shape = 's32[]', space=sflag, size = 0x4, offset = 0, fixed_abs, tag = 'sflag constant byte address 0x0 - dummy sync flag']
  #allocation25 [shape = 's32[]', space=sflag, size = 0x4, offset = 0, fixed_abs, tag = 'sflag constant byte address 0x0 - dummy sync flag']
  #allocation26 [shape = 's32[]', space=sflag, size = 0x4, offset = 0, fixed_abs, tag = 'sflag constant byte address 0x0 - dummy sync flag']
  #allocation27 [shape = 's32[]', space=sflag, size = 0x4, offset = 0, fixed_abs, tag = 'sflag constant byte address 0x0 - dummy sync flag']
  #allocation28 [shape = 's32[]', space=sflag, size = 0x4, offset = 0, fixed_abs, tag = 'sflag constant byte address 0x0 - dummy sync flag']
  #allocation29 [shape = 's32[]', space=sflag, size = 0x4, offset = 0, fixed_abs, tag = 'sflag constant byte address 0x0 - dummy sync flag']
  #allocation30 [shape = 's32[]', space=sflag, size = 0x4, offset = 0, fixed_abs, tag = 'sflag constant byte address 0x0 - dummy sync flag']
  #allocation31 [shape = 's32[]', space=sflag, size = 0x4, offset = 0, fixed_abs, tag = 'sflag constant byte address 0x0 - dummy sync flag']
  %s0 = inlined_call_operand.hbm [shape: s32[7], index: 0, kind: input, shape index: {}]
  %s1 = inlined_call_operand.hbm [shape: f32[1024,128], index: 1, kind: input, shape index: {}]
  %s2 = inlined_call_operand.hbm [shape: bf16[1024,128], index: 2, kind: input, shape index: {}]
  %s3 = inlined_call_operand.hbm [shape: bf16[128,896], index: 3, kind: input, shape index: {}]
  %s4 = inlined_call_operand.vmem [shape: f32[1,128], index: 4, kind: input, shape index: {}]
  %s5 = inlined_call_operand.hbm [shape: f32[1,1024], index: 5, kind: input, shape index: {}]
  %s6 = inlined_call_operand.hbm [shape: f32[1,1024], index: 6, kind: output, shape index: {}]
  %s7 = sld [smem:[#allocation0]]
  $region104: #{tpu_custom_call.1} parent=0
    _
  %s9 = ssub.s32 1, %s7
  %s10 = scalar_select 0, %s9, %s7
  %s12 = sshll.u32 %s0, 4
  %s13 = int_to_ptr.hbm [resolvable:$true] %s12
  %15 = dma.hbm_to_smem %s13, 16, [#allocation8], [#allocation7]
  %17 = dma.done [#allocation7], 16
  %18 = sfence
  $region1: #{tpu_custom_call.1} parent=0
    #allocation9 [shape = 'u8[262144]{0}', space=vmem, size = 0x40000, scoped, tag = 'input window, operand 2']
    #allocation10 [shape = 's32[2]{0}', space=sflag, size = 0x8, scoped, tag = 'scoped memory for tpu_custom_call.1']
    #allocation11 [shape = 's32[2]{0}', space=sflag, size = 0x8, scoped, tag = 'scoped memory for tpu_custom_call.1']
    #allocation12 [shape = 'u8[229376]{0}', space=vmem, size = 0x38000, scoped, tag = 'input window, operand 3, single buffered']
    #allocation13 [shape = 's32[1]{0}', space=sflag, size = 0x4, scoped, tag = 'scoped memory for tpu_custom_call.1']
    #allocation14 [shape = 'u8[4096]{0}', space=vmem, size = 0x1000, scoped, tag = 'input window, operand 5']
    #allocation15 [shape = 'u8[4096]{0}', space=vmem, size = 0x1000, scoped, tag = 'output window, operand 0, single buffered']
    %19 = vsyncpa [#allocation10], 0
    %s20 = scalar_lea.sflag [#allocation10], 1
    %21 = vsyncpa %s20, 0
    %22 = vsyncpa [#allocation13], 0
    %23 = vsyncpa [#allocation11], 0
    loop: start=0, step=1, limit=4
    $region2: #{tpu_custom_call.1} parent=1 // loop_pre_header
      _
    $region3: #{tpu_custom_call.1} parent=1 // loop_header
      %s25 = sphi 0, %s29
      %p26 = scmp.ge.s32.totalorder %s25, 4
      %s35 = sphi 0, %s37
      %s38 = sphi 0, %s35
      %s39 = sphi 0, %s38
      %s55 = sphi 0, %s39
      %s59 = sphi 0, %s59
      %s61 = sphi 0, %s59
      %s62 = sphi 0, %s61
      %s76 = sphi 0, %s62
      %s80 = sphi 0, %s80
      %s82 = sphi 0, %s80
      %s83 = sphi 0, %s82
      %s97 = sphi 0, %s83
      %s103 = sphi 0, %s105
      %s106 = sphi 0, %s103
      %s107 = sphi 0, %s106
      %s123 = sphi 0, %s107
      %s127 = sphi 0, %s127
      %s129 = sphi 0, %s127
      %s130 = sphi 0, %s129
      %s144 = sphi 0, %s130
    $region4: #{tpu_custom_call.1} parent=1 // loop_header_branch
      %28 = sbr.rel (%p26) target = $region8
    $region5: #{tpu_custom_call.1} parent=1 // loop_body
      %s30 = ssub.s32 %s25, 1
      %s31 = ssub.s32 %s25, 2
      %s32 = sadd.s32 %s25, 1
      %s33 = ssub.s32 %s25, %s32
      %p34 = scmp.eq.s32.totalorder %s33, 0
      %s36 = sadd.s32 %s35, 1
      %s37 = scalar_select %p34, %s35, %s36
      %p40 = pneg %p34
      %p41 = scmp.eq.s32.totalorder %s25, 1
      %p42 = por %p40, %p41
      %p43 = scmp.ne.s32.totalorder %s35, %s38
      %p44 = scmp.eq.s32.totalorder %s25, 0
      %p45 = por %p43, %p44
      %p46 = scmp.ne.s32.totalorder %s35, %s38
      %p47 = scmp.eq.s32.totalorder %s30, 1
      %p48 = por %p46, %p47
      %p49 = scmp.ne.s32.totalorder %s38, %s39
      %p50 = scmp.eq.s32.totalorder %s30, 0
      %p51 = por %p49, %p50
      %p52 = scmp.ne.s32.totalorder %s38, %s39
      %p53 = scmp.eq.s32.totalorder %s31, 1
      %p54 = por %p52, %p53
      %p56 = scmp.ne.s32.totalorder %s39, %s55
      %p57 = scmp.eq.s32.totalorder %s31, 0
      %p58 = por %p56, %p57
      %s60 = sadd.s32 %s59, 1
      %p63 = scmp.eq.s32.totalorder %s25, 1
      %p64 = scmp.ne.s32.totalorder %s59, %s61
      %p65 = scmp.eq.s32.totalorder %s25, 0
      %p66 = por %p64, %p65
      %p67 = scmp.ne.s32.totalorder %s59, %s61
      %p68 = scmp.eq.s32.totalorder %s30, 1
      %p69 = por %p67, %p68
      %p70 = scmp.ne.s32.totalorder %s61, %s62
      %p71 = scmp.eq.s32.totalorder %s30, 0
      %p72 = por %p70, %p71
      %p73 = scmp.ne.s32.totalorder %s61, %s62
      %p74 = scmp.eq.s32.totalorder %s31, 1
      %p75 = por %p73, %p74
      %p77 = scmp.ne.s32.totalorder %s62, %s76
      %p78 = scmp.eq.s32.totalorder %s31, 0
      %p79 = por %p77, %p78
      %s81 = sadd.s32 %s80, 1
      %p84 = scmp.eq.s32.totalorder %s25, 1
      %p85 = scmp.ne.s32.totalorder %s80, %s82
      %p86 = scmp.eq.s32.totalorder %s25, 0
      %p87 = por %p85, %p86
      %p88 = scmp.ne.s32.totalorder %s80, %s82
      %p89 = scmp.eq.s32.totalorder %s30, 1
      %p90 = por %p88, %p89
      %p91 = scmp.ne.s32.totalorder %s82, %s83
      %p92 = scmp.eq.s32.totalorder %s30, 0
      %p93 = por %p91, %p92
      %p94 = scmp.ne.s32.totalorder %s82, %s83
      %p95 = scmp.eq.s32.totalorder %s31, 1
      %p96 = por %p94, %p95
      %p98 = scmp.ne.s32.totalorder %s83, %s97
      %p99 = scmp.eq.s32.totalorder %s31, 0
      %p100 = por %p98, %p99
      %s101 = ssub.s32 %s25, %s32
      %p102 = scmp.eq.s32.totalorder %s101, 0
      %s104 = sadd.s32 %s103, 1
      %s105 = scalar_select %p102, %s103, %s104
      %p108 = pneg %p102
      %p109 = scmp.eq.s32.totalorder %s25, 1
      %p110 = por %p108, %p109
      %p111 = scmp.ne.s32.totalorder %s103, %s106
      %p112 = scmp.eq.s32.totalorder %s25, 0
      %p113 = por %p111, %p112
      %p114 = scmp.ne.s32.totalorder %s103, %s106
      %p115 = scmp.eq.s32.totalorder %s30, 1
      %p116 = por %p114, %p115
      %p117 = scmp.ne.s32.totalorder %s106, %s107
      %p118 = scmp.eq.s32.totalorder %s30, 0
      %p119 = por %p117, %p118
      %p120 = scmp.ne.s32.totalorder %s106, %s107
      %p121 = scmp.eq.s32.totalorder %s31, 1
      %p122 = por %p120, %p121
      %p124 = scmp.ne.s32.totalorder %s107, %s123
      %p125 = scmp.eq.s32.totalorder %s31, 0
      %p126 = por %p124, %p125
      %s128 = sadd.s32 %s127, 1
      %p131 = scmp.eq.s32.totalorder %s25, 1
      %p132 = scmp.ne.s32.totalorder %s127, %s129
      %p133 = scmp.eq.s32.totalorder %s25, 0
      %p134 = por %p132, %p133
      %p135 = scmp.ne.s32.totalorder %s127, %s129
      %p136 = scmp.eq.s32.totalorder %s30, 1
      %p137 = por %p135, %p136
      %p138 = scmp.ne.s32.totalorder %s129, %s130
      %p139 = scmp.eq.s32.totalorder %s30, 0
      %p140 = por %p138, %p139
      %p141 = scmp.ne.s32.totalorder %s129, %s130
      %p142 = scmp.eq.s32.totalorder %s31, 1
      %p143 = por %p141, %p142
      %p145 = scmp.ne.s32.totalorder %s130, %s144
      %p146 = scmp.eq.s32.totalorder %s31, 0
      %p147 = por %p145, %p146
      %p148 = scmp.le.s32.totalorder 1, %s25
      %p149 = scmp.lt.s32.totalorder %s25, 3
      %p150 = pnand %p148, %p149
      %p151 = pneg %p150
      // Predicated region
      $region9: #{tpu_custom_call.1} parent=5 // pred_check
        _
      $region10: #{tpu_custom_call.1} parent=5 // pred_check_branch
        %153 = sbr.rel (%p150) target = $region12
      $region11: #{tpu_custom_call.1} parent=5 // pred_region
        %s154 = ssub.s32 %s25, 1
        // Predicated region
        $region13: #{tpu_custom_call.1} parent=11 // pred_check
          %p155 = pneg %p72
        $region14: #{tpu_custom_call.1} parent=11 // pred_check_branch
          %157 = sbr.rel (%p155) target = $region16
        $region15: #{tpu_custom_call.1} parent=11 // pred_region
          %159 = vsyncadd [#allocation13], 0
          %s160 = sshll.u32 %s3, 4
          %s161 = int_to_ptr.hbm [resolvable:$true] %s160
          %s162 = sshll.u32 [#allocation12], 4
          %s163 = int_to_ptr.vmem [resolvable:$true] %s162
          %168 = dma.hbm_to_vmem [thread:$0]  %s161, 7168, %s163, [#allocation13], 448, 448, 28
        $region16: #{tpu_custom_call.1} parent=11 // pred_fallthru
          _
        // Predicated region
        $region17: #{tpu_custom_call.1} parent=11 // pred_check
          %p169 = pneg %p93
        $region18: #{tpu_custom_call.1} parent=11 // pred_check_branch
          %171 = sbr.rel (%p169) target = $region20
        $region19: #{tpu_custom_call.1} parent=11 // pred_region
          _
        $region20: #{tpu_custom_call.1} parent=11 // pred_fallthru
          _
      $region12: #{tpu_custom_call.1} parent=5 // pred_fallthru
        _
      %p172 = scmp.lt.s32.totalorder %s25, 2
      // Predicated region
      $region21: #{tpu_custom_call.1} parent=5 // pred_check
        %p173 = pneg %p172
      $region22: #{tpu_custom_call.1} parent=5 // pred_check_branch
        %175 = sbr.rel (%p173) target = $region24
      $region23: #{tpu_custom_call.1} parent=5 // pred_region
        // Predicated region
        $region25: #{tpu_custom_call.1} parent=23 // pred_check
          %p176 = pneg %p45
        $region26: #{tpu_custom_call.1} parent=23 // pred_check_branch
          %178 = sbr.rel (%p176) target = $region28
        $region27: #{tpu_custom_call.1} parent=23 // pred_region
          %s179 = sand.u32 %s25, 1
          %s180 = scalar_lea.sflag [#allocation10], %s179
          %s181 = sand.u32 %s35, 1
          %s182 = smul.addr %s181, 256
          %s183 = scalar_lea.vmem [#allocation9], %s182
          %s184 = smul.u32 64, %s25
          %186 = vsyncadd %s180, 0
          %s187 = smul.addr %s184, 4
          %s188 = scalar_lea.hbm %s2, %s187
          %s189 = sshll.u32 %s188, 4
          %s190 = int_to_ptr.hbm [resolvable:$true] %s189
          %s191 = sshll.u32 %s183, 4
          %s192 = int_to_ptr.vmem [resolvable:$true] %s191
          %197 = dma.hbm_to_vmem [thread:$0]  %s190, 4096, %s192, %s180, 64, 64, 4
        $region28: #{tpu_custom_call.1} parent=23 // pred_fallthru
          _
        // Predicated region
        $region29: #{tpu_custom_call.1} parent=23 // pred_check
          %p198 = pneg %p113
        $region30: #{tpu_custom_call.1} parent=23 // pred_check_branch
          %200 = sbr.rel (%p198) target = $region32
        $region31: #{tpu_custom_call.1} parent=23 // pred_region
          %s201 = sand.u32 %s25, 1
          %s202 = scalar_lea.sflag [#allocation10], %s201
          %s203 = sand.u32 %s103, 1
          %s204 = smul.addr %s203, 4
          %s205 = scalar_lea.vmem [#allocation14], %s204
          %s206 = smul.u32 4, %s25
          %208 = vsyncadd %s202, 0
          %s209 = scalar_lea.hbm %s5, %s206
          %s211 = sshll.u32 %s209, 4
          %s212 = int_to_ptr.hbm [resolvable:$true] %s211
          %s213 = sshll.u32 %s205, 4
          %s214 = int_to_ptr.vmem [resolvable:$true] %s213
          %216 = dma.hbm_to_vmem [thread:$0]  %s212, 64, %s214, %s202
        $region32: #{tpu_custom_call.1} parent=23 // pred_fallthru
          _
      $region24: #{tpu_custom_call.1} parent=5 // pred_fallthru
        _
      %p217 = scmp.le.s32.totalorder 1, %s25
      %p218 = scmp.lt.s32.totalorder %s25, 3
      %p219 = pnand %p217, %p218
      %p220 = pneg %p219
      // Predicated region
      $region33: #{tpu_custom_call.1} parent=5 // pred_check
        _
      $region34: #{tpu_custom_call.1} parent=5 // pred_check_branch
        %222 = sbr.rel (%p219) target = $region36
      $region35: #{tpu_custom_call.1} parent=5 // pred_region
        %s223 = ssub.s32 %s25, 1
        %s224 = sand.u32 %s30, 1
        %s225 = scalar_lea.sflag [#allocation10], %s224
        %s226 = sand.u32 %s38, 1
        %s227 = smul.addr %s226, 256
        %s228 = scalar_lea.vmem [#allocation9], %s227
        // Predicated region
        $region37: #{tpu_custom_call.1} parent=35 // pred_check
          %p229 = pneg %p51
        $region38: #{tpu_custom_call.1} parent=35 // pred_check_branch
          %231 = sbr.rel (%p229) target = $region40
        $region39: #{tpu_custom_call.1} parent=35 // pred_region
          %233 = dma.done %s225, 4096
        $region40: #{tpu_custom_call.1} parent=35 // pred_fallthru
          _
        // Predicated region
        $region41: #{tpu_custom_call.1} parent=35 // pred_check
          %p234 = pneg %p72
        $region42: #{tpu_custom_call.1} parent=35 // pred_check_branch
          %236 = sbr.rel (%p234) target = $region44
        $region43: #{tpu_custom_call.1} parent=35 // pred_region
          %238 = dma.done [#allocation13], 7168
        $region44: #{tpu_custom_call.1} parent=35 // pred_fallthru
          _
        %s239 = sand.u32 %s30, 1
        %s240 = scalar_lea.sflag [#allocation10], %s239
        %s241 = sand.u32 %s106, 1
        %s242 = smul.addr %s241, 4
        %s243 = scalar_lea.vmem [#allocation14], %s242
        // Predicated region
        $region45: #{tpu_custom_call.1} parent=35 // pred_check
          %p244 = pneg %p119
        $region46: #{tpu_custom_call.1} parent=35 // pred_check_branch
          %246 = sbr.rel (%p244) target = $region48
        $region47: #{tpu_custom_call.1} parent=35 // pred_region
          %248 = dma.done %s240, 64
        $region48: #{tpu_custom_call.1} parent=35 // pred_fallthru
          _
        %s249 = sand.u32 %s30, 1
        %s250 = scalar_lea.sflag [#allocation10], %s249
        %s251 = sand.u32 %s38, 1
        %s252 = smul.addr %s251, 256
        %s253 = scalar_lea.vmem [#allocation9], %s252
        %p254 = pneg %p51
        %p255 = pneg %p48
        %p256 = pneg %p72
        %p257 = pneg %p69
        %p258 = pneg %p93
        %p259 = pneg %p90
        %s260 = sand.u32 %s30, 1
        %s261 = scalar_lea.sflag [#allocation10], %s260
        %s262 = sand.u32 %s106, 1
        %s263 = smul.addr %s262, 4
        %s264 = scalar_lea.vmem [#allocation14], %s263
        %p265 = pneg %p119
        %p266 = pneg %p116
        %p267 = pneg %p140
        %p268 = pneg %p137
        %s269 = smul.u32 64, %s30
        %s270 = smul.u32 4, %s30
        %p271 = scmp.eq.s32.totalorder %s30, 0
        // Predicated region
        $region49: #{tpu_custom_call.1} parent=35 // pred_check
          %p272 = pneg %p271
        $region50: #{tpu_custom_call.1} parent=35 // pred_check_branch
          %274 = sbr.rel (%p272) target = $region52
        $region51: #{tpu_custom_call.1} parent=35 // pred_region
          %s275 = sld [smem:[#allocation8]]
          %s276 = scalar_lea.hbm %s1, %s275
          // Predicated region
          $region53: #{tpu_custom_call.1} parent=51 // pred_check
            _
          $region54: #{tpu_custom_call.1} parent=51 // pred_check_branch
            %278 = sbr.rel target = $region56
          $region55: #{tpu_custom_call.1} parent=51 // pred_region
            %279 = sst [smem:[#allocation18]] [#allocation17]
            %280 = sst [smem:[#allocation19]] [#allocation16]
          $region56: #{tpu_custom_call.1} parent=51 // pred_fallthru
            _
          %282 = shalt.err (0)
          %s284 = sshll.u32 %s276, 4
          %s285 = int_to_ptr.hbm [resolvable:$true] %s284
          %s286 = sshll.u32 [#allocation2], 4
          %s287 = int_to_ptr.vmem [resolvable:$true] %s286
          %289 = dma.hbm_to_vmem [thread:$0]  %s285, 16, %s287, [#allocation6]
          %s290 = sld [smem:[#allocation8 + $0x1]]
          %s291 = scalar_lea.hbm %s1, %s290
          %s292 = scalar_lea.vmem [#allocation2], 1
          // Predicated region
          $region57: #{tpu_custom_call.1} parent=51 // pred_check
            _
          $region58: #{tpu_custom_call.1} parent=51 // pred_check_branch
            %294 = sbr.rel target = $region60
          $region59: #{tpu_custom_call.1} parent=51 // pred_region
            %295 = sst [smem:[#allocation18]] [#allocation21]
            %296 = sst [smem:[#allocation19]] [#allocation20]
          $region60: #{tpu_custom_call.1} parent=51 // pred_fallthru
            _
          %298 = shalt.err (0)
          %s300 = sshll.u32 %s291, 4
          %s301 = int_to_ptr.hbm [resolvable:$true] %s300
          %s302 = sshll.u32 %s292, 4
          %s303 = int_to_ptr.vmem [resolvable:$true] %s302
          %305 = dma.hbm_to_vmem [thread:$0]  %s301, 16, %s303, [#allocation6]
          %s306 = sld [smem:[#allocation8 + $0x2]]
          %s307 = scalar_lea.hbm %s1, %s306
          %s308 = scalar_lea.vmem [#allocation2], 2
          // Predicated region
          $region61: #{tpu_custom_call.1} parent=51 // pred_check
            _
          $region62: #{tpu_custom_call.1} parent=51 // pred_check_branch
            %310 = sbr.rel target = $region64
          $region63: #{tpu_custom_call.1} parent=51 // pred_region
            %311 = sst [smem:[#allocation18]] [#allocation23]
            %312 = sst [smem:[#allocation19]] [#allocation22]
          $region64: #{tpu_custom_call.1} parent=51 // pred_fallthru
            _
          %314 = shalt.err (0)
          %s316 = sshll.u32 %s307, 4
          %s317 = int_to_ptr.hbm [resolvable:$true] %s316
          %s318 = sshll.u32 %s308, 4
          %s319 = int_to_ptr.vmem [resolvable:$true] %s318
          %321 = dma.hbm_to_vmem [thread:$0]  %s317, 16, %s319, [#allocation6]
          %s322 = sld [smem:[#allocation8 + $0x3]]
          %s323 = scalar_lea.hbm %s1, %s322
          %s324 = scalar_lea.vmem [#allocation2], 3
          // Predicated region
          $region65: #{tpu_custom_call.1} parent=51 // pred_check
            _
          $region66: #{tpu_custom_call.1} parent=51 // pred_check_branch
            %326 = sbr.rel target = $region68
          $region67: #{tpu_custom_call.1} parent=51 // pred_region
            %327 = sst [smem:[#allocation18]] [#allocation25]
            %328 = sst [smem:[#allocation19]] [#allocation24]
          $region68: #{tpu_custom_call.1} parent=51 // pred_fallthru
            _
          %330 = shalt.err (0)
          %s332 = sshll.u32 %s323, 4
          %s333 = int_to_ptr.hbm [resolvable:$true] %s332
          %s334 = sshll.u32 %s324, 4
          %s335 = int_to_ptr.vmem [resolvable:$true] %s334
          %337 = dma.hbm_to_vmem [thread:$0]  %s333, 16, %s335, [#allocation6]
          %s338 = sld [smem:[#allocation8 + $0x4]]
          %s339 = scalar_lea.hbm %s1, %s338
          %s340 = scalar_lea.vmem [#allocation2], 4
          // Predicated region
          $region69: #{tpu_custom_call.1} parent=51 // pred_check
            _
          $region70: #{tpu_custom_call.1} parent=51 // pred_check_branch
            %342 = sbr.rel target = $region72
          $region71: #{tpu_custom_call.1} parent=51 // pred_region
            %343 = sst [smem:[#allocation18]] [#allocation27]
            %344 = sst [smem:[#allocation19]] [#allocation26]
          $region72: #{tpu_custom_call.1} parent=51 // pred_fallthru
            _
          %346 = shalt.err (0)
          %s348 = sshll.u32 %s339, 4
          %s349 = int_to_ptr.hbm [resolvable:$true] %s348
          %s350 = sshll.u32 %s340, 4
          %s351 = int_to_ptr.vmem [resolvable:$true] %s350
          %353 = dma.hbm_to_vmem [thread:$0]  %s349, 16, %s351, [#allocation6]
          %s354 = sld [smem:[#allocation8 + $0x5]]
          %s355 = scalar_lea.hbm %s1, %s354
          %s356 = scalar_lea.vmem [#allocation2], 5
          // Predicated region
          $region73: #{tpu_custom_call.1} parent=51 // pred_check
            _
          $region74: #{tpu_custom_call.1} parent=51 // pred_check_branch
            %358 = sbr.rel target = $region76
          $region75: #{tpu_custom_call.1} parent=51 // pred_region
            %359 = sst [smem:[#allocation18]] [#allocation29]
            %360 = sst [smem:[#allocation19]] [#allocation28]
          $region76: #{tpu_custom_call.1} parent=51 // pred_fallthru
            _
          %362 = shalt.err (0)
          %s364 = sshll.u32 %s355, 4
          %s365 = int_to_ptr.hbm [resolvable:$true] %s364
          %s366 = sshll.u32 %s356, 4
          %s367 = int_to_ptr.vmem [resolvable:$true] %s366
          %369 = dma.hbm_to_vmem [thread:$0]  %s365, 16, %s367, [#allocation6]
          %s370 = sld [smem:[#allocation8 + $0x6]]
          %s371 = scalar_lea.hbm %s1, %s370
          %s372 = scalar_lea.vmem [#allocation2], 6
          // Predicated region
          $region77: #{tpu_custom_call.1} parent=51 // pred_check
            _
          $region78: #{tpu_custom_call.1} parent=51 // pred_check_branch
            %374 = sbr.rel target = $region80
          $region79: #{tpu_custom_call.1} parent=51 // pred_region
            %375 = sst [smem:[#allocation18]] [#allocation31]
            %376 = sst [smem:[#allocation19]] [#allocation30]
          $region80: #{tpu_custom_call.1} parent=51 // pred_fallthru
            _
          %378 = shalt.err (0)
          %s380 = sshll.u32 %s371, 4
          %s381 = int_to_ptr.hbm [resolvable:$true] %s380
          %s382 = sshll.u32 %s372, 4
          %s383 = int_to_ptr.vmem [resolvable:$true] %s382
          %385 = dma.hbm_to_vmem [thread:$0]  %s381, 16, %s383, [#allocation6]
          %s386 = smul.u32 1, 1
          %s387 = sshll.u32 %s386, 4
          %388 = dma.done [#allocation6], %s387
          %s389 = sshll.u32 %s386, 4
          %390 = dma.done [#allocation6], %s389
          %s391 = sshll.u32 %s386, 4
          %392 = dma.done [#allocation6], %s391
          %s393 = sshll.u32 %s386, 4
          %394 = dma.done [#allocation6], %s393
          %s395 = sshll.u32 %s386, 4
          %396 = dma.done [#allocation6], %s395
          %s397 = sshll.u32 %s386, 4
          %398 = dma.done [#allocation6], %s397
          %s399 = sshll.u32 %s386, 4
          %400 = dma.done [#allocation6], %s399
          %v401 = vld [vmem:[#allocation2] sm:$0xff]
          %v403 = vperm.slane %v401, 0
          %v404 = vperm.slane %v401, 1
          %v405 = vperm.slane %v401, 2
          %v406 = vperm.slane %v401, 3
          %v407 = vperm.slane %v401, 4
          %v408 = vperm.slane %v401, 5
          %v409 = vperm.slane %v401, 6
          %v417 = vpack.c.bf16 %v403, %v403
          %v418 = vpack.c.bf16 %v404, %v404
          %v419 = vpack.c.bf16 %v405, %v405
          %v420 = vpack.c.bf16 %v406, %v406
          %v421 = vpack.c.bf16 %v407, %v407
          %v422 = vpack.c.bf16 %v408, %v408
          %v423 = vpack.c.bf16 %v409, %v409
          %v424 = vld [vmem:[#allocation12] sm:$0xff]
          %v425 = vld [vmem:[#allocation12 + $0x8] sm:$0xff]
          %v426 = vld [vmem:[#allocation12 + $0x10] sm:$0xff]
          %v427 = vld [vmem:[#allocation12 + $0x18] sm:$0xf]
          %v428 = vld [vmem:[#allocation12 + $0x1c] sm:$0xff]
          %v429 = vld [vmem:[#allocation12 + $0x24] sm:$0xff]
          %v430 = vld [vmem:[#allocation12 + $0x2c] sm:$0xff]
          %v431 = vld [vmem:[#allocation12 + $0x34] sm:$0xf]
          %v432 = vld [vmem:[#allocation12 + $0x38] sm:$0xff]
          %v433 = vld [vmem:[#allocation12 + $0x40] sm:$0xff]
          %v434 = vld [vmem:[#allocation12 + $0x48] sm:$0xff]
          %v435 = vld [vmem:[#allocation12 + $0x50] sm:$0xf]
          %v436 = vld [vmem:[#allocation12 + $0x54] sm:$0xff]
          %v437 = vld [vmem:[#allocation12 + $0x5c] sm:$0xff]
          %v438 = vld [vmem:[#allocation12 + $0x64] sm:$0xff]
          %v439 = vld [vmem:[#allocation12 + $0x6c] sm:$0xf]
          %v440 = vld [vmem:[#allocation12 + $0x70] sm:$0xff]
          %v441 = vld [vmem:[#allocation12 + $0x78] sm:$0xff]
          %v442 = vld [vmem:[#allocation12 + $0x80] sm:$0xff]
          %v443 = vld [vmem:[#allocation12 + $0x88] sm:$0xf]
          %v444 = vld [vmem:[#allocation12 + $0x8c] sm:$0xff]
          %v445 = vld [vmem:[#allocation12 + $0x94] sm:$0xff]
          %v446 = vld [vmem:[#allocation12 + $0x9c] sm:$0xff]
          %v447 = vld [vmem:[#allocation12 + $0xa4] sm:$0xf]
          %v448 = vld [vmem:[#allocation12 + $0xa8] sm:$0xff]
          %v449 = vld [vmem:[#allocation12 + $0xb0] sm:$0xff]
          %v450 = vld [vmem:[#allocation12 + $0xb8] sm:$0xff]
          %v451 = vld [vmem:[#allocation12 + $0xc0] sm:$0xf]
          %v452 = vld [vmem:[#allocation12 + $0xc4] sm:$0xff]
          %v453 = vld [vmem:[#allocation12 + $0xcc] sm:$0xff]
          %v454 = vld [vmem:[#allocation12 + $0xd4] sm:$0xff]
          %v455 = vld [vmem:[#allocation12 + $0xdc] sm:$0xf]
          %v456 = vld [vmem:[#allocation12 + $0xe0] sm:$0xff]
          %v457 = vld [vmem:[#allocation12 + $0xe8] sm:$0xff]
          %v458 = vld [vmem:[#allocation12 + $0xf0] sm:$0xff]
          %v459 = vld [vmem:[#allocation12 + $0xf8] sm:$0xf]
          %v460 = vld [vmem:[#allocation12 + $0xfc] sm:$0xff]
          %v461 = vld [vmem:[#allocation12 + $0x104] sm:$0xff]
          %v462 = vld [vmem:[#allocation12 + $0x10c] sm:$0xff]
          %v463 = vld [vmem:[#allocation12 + $0x114] sm:$0xf]
          %v464 = vld [vmem:[#allocation12 + $0x118] sm:$0xff]
          %v465 = vld [vmem:[#allocation12 + $0x120] sm:$0xff]
          %v466 = vld [vmem:[#allocation12 + $0x128] sm:$0xff]
          %v467 = vld [vmem:[#allocation12 + $0x130] sm:$0xf]
          %v468 = vld [vmem:[#allocation12 + $0x134] sm:$0xff]
          %v469 = vld [vmem:[#allocation12 + $0x13c] sm:$0xff]
          %v470 = vld [vmem:[#allocation12 + $0x144] sm:$0xff]
          %v471 = vld [vmem:[#allocation12 + $0x14c] sm:$0xf]
          %v472 = vld [vmem:[#allocation12 + $0x150] sm:$0xff]
          %v473 = vld [vmem:[#allocation12 + $0x158] sm:$0xff]
          %v474 = vld [vmem:[#allocation12 + $0x160] sm:$0xff]
          %v475 = vld [vmem:[#allocation12 + $0x168] sm:$0xf]
          %v476 = vld [vmem:[#allocation12 + $0x16c] sm:$0xff]
          %v477 = vld [vmem:[#allocation12 + $0x174] sm:$0xff]
          %v478 = vld [vmem:[#allocation12 + $0x17c] sm:$0xff]
          %v479 = vld [vmem:[#allocation12 + $0x184] sm:$0xf]
          %v480 = vld [vmem:[#allocation12 + $0x188] sm:$0xff]
          %v481 = vld [vmem:[#allocation12 + $0x190] sm:$0xff]
          %v482 = vld [vmem:[#allocation12 + $0x198] sm:$0xff]
          %v483 = vld [vmem:[#allocation12 + $0x1a0] sm:$0xf]
          %v484 = vld [vmem:[#allocation12 + $0x1a4] sm:$0xff]
          %v485 = vld [vmem:[#allocation12 + $0x1ac] sm:$0xff]
          %v486 = vld [vmem:[#allocation12 + $0x1b4] sm:$0xff]
          %v487 = vld [vmem:[#allocation12 + $0x1bc] sm:$0xf]
          %v488 = vld [vmem:[%s4] sm:$0x1]
          %v553 = vunpack.c.l.b16 %v424
          %v554 = vunpack.c.h.b16 %v424
          %v555 = vunpack.c.l.b16 %v425
          %v556 = vunpack.c.h.b16 %v425
          %v557 = vunpack.c.l.b16 %v426
          %v558 = vunpack.c.h.b16 %v426
          %v559 = vunpack.c.l.b16 %v427
          %v560 = vunpack.c.l.b16 %v428
          %v561 = vunpack.c.h.b16 %v428
          %v562 = vunpack.c.l.b16 %v429
          %v563 = vunpack.c.h.b16 %v429
          %v564 = vunpack.c.l.b16 %v430
          %v565 = vunpack.c.h.b16 %v430
          %v566 = vunpack.c.l.b16 %v431
          %v567 = vunpack.c.l.b16 %v432
          %v568 = vunpack.c.h.b16 %v432
          %v569 = vunpack.c.l.b16 %v433
          %v570 = vunpack.c.h.b16 %v433
          %v571 = vunpack.c.l.b16 %v434
          %v572 = vunpack.c.h.b16 %v434
          %v573 = vunpack.c.l.b16 %v435
          %v574 = vunpack.c.l.b16 %v436
          %v575 = vunpack.c.h.b16 %v436
          %v576 = vunpack.c.l.b16 %v437
          %v577 = vunpack.c.h.b16 %v437
          %v578 = vunpack.c.l.b16 %v438
          %v579 = vunpack.c.h.b16 %v438
          %v580 = vunpack.c.l.b16 %v439
          %v581 = vunpack.c.l.b16 %v440
          %v582 = vunpack.c.h.b16 %v440
          %v583 = vunpack.c.l.b16 %v441
          %v584 = vunpack.c.h.b16 %v441
          %v585 = vunpack.c.l.b16 %v442
          %v586 = vunpack.c.h.b16 %v442
          %v587 = vunpack.c.l.b16 %v443
          %v588 = vunpack.c.l.b16 %v444
          %v589 = vunpack.c.h.b16 %v444
          %v590 = vunpack.c.l.b16 %v445
          %v591 = vunpack.c.h.b16 %v445
          %v592 = vunpack.c.l.b16 %v446
          %v593 = vunpack.c.h.b16 %v446
          %v594 = vunpack.c.l.b16 %v447
          %v595 = vunpack.c.l.b16 %v448
          %v596 = vunpack.c.h.b16 %v448
          %v597 = vunpack.c.l.b16 %v449
          %v598 = vunpack.c.h.b16 %v449
          %v599 = vunpack.c.l.b16 %v450
          %v600 = vunpack.c.h.b16 %v450
          %v601 = vunpack.c.l.b16 %v451
          %v602 = vunpack.c.l.b16 %v452
          %v603 = vunpack.c.h.b16 %v452
          %v604 = vunpack.c.l.b16 %v453
          %v605 = vunpack.c.h.b16 %v453
          %v606 = vunpack.c.l.b16 %v454
          %v607 = vunpack.c.h.b16 %v454
          %v608 = vunpack.c.l.b16 %v455
          %v609 = vunpack.c.l.b16 %v456
          %v610 = vunpack.c.h.b16 %v456
          %v611 = vunpack.c.l.b16 %v457
          %v612 = vunpack.c.h.b16 %v457
          %v613 = vunpack.c.l.b16 %v458
          %v614 = vunpack.c.h.b16 %v458
          %v615 = vunpack.c.l.b16 %v459
          %v616 = vunpack.c.l.b16 %v460
          %v617 = vunpack.c.h.b16 %v460
          %v618 = vunpack.c.l.b16 %v461
          %v619 = vunpack.c.h.b16 %v461
          %v620 = vunpack.c.l.b16 %v462
          %v621 = vunpack.c.h.b16 %v462
          %v622 = vunpack.c.l.b16 %v463
          %v623 = vunpack.c.l.b16 %v464
          %v624 = vunpack.c.h.b16 %v464
          %v625 = vunpack.c.l.b16 %v465
          %v626 = vunpack.c.h.b16 %v465
          %v627 = vunpack.c.l.b16 %v466
          %v628 = vunpack.c.h.b16 %v466
          %v629 = vunpack.c.l.b16 %v467
          %v630 = vunpack.c.l.b16 %v468
          %v631 = vunpack.c.h.b16 %v468
          %v632 = vunpack.c.l.b16 %v469
          %v633 = vunpack.c.h.b16 %v469
          %v634 = vunpack.c.l.b16 %v470
          %v635 = vunpack.c.h.b16 %v470
          %v636 = vunpack.c.l.b16 %v471
          %v637 = vunpack.c.l.b16 %v472
          %v638 = vunpack.c.h.b16 %v472
          %v639 = vunpack.c.l.b16 %v473
          %v640 = vunpack.c.h.b16 %v473
          %v641 = vunpack.c.l.b16 %v474
          %v642 = vunpack.c.h.b16 %v474
          %v643 = vunpack.c.l.b16 %v475
          %v644 = vunpack.c.l.b16 %v476
          %v645 = vunpack.c.h.b16 %v476
          %v646 = vunpack.c.l.b16 %v477
          %v647 = vunpack.c.h.b16 %v477
          %v648 = vunpack.c.l.b16 %v478
          %v649 = vunpack.c.h.b16 %v478
          %v650 = vunpack.c.l.b16 %v479
          %v651 = vunpack.c.l.b16 %v480
          %v652 = vunpack.c.h.b16 %v480
          %v653 = vunpack.c.l.b16 %v481
          %v654 = vunpack.c.h.b16 %v481
          %v655 = vunpack.c.l.b16 %v482
          %v656 = vunpack.c.h.b16 %v482
          %v657 = vunpack.c.l.b16 %v483
          %v658 = vunpack.c.l.b16 %v484
          %v659 = vunpack.c.h.b16 %v484
          %v660 = vunpack.c.l.b16 %v485
          %v661 = vunpack.c.h.b16 %v485
          %v662 = vunpack.c.l.b16 %v486
          %v663 = vunpack.c.h.b16 %v486
          %v664 = vunpack.c.l.b16 %v487
          %v665 = vpack.c.b16 %v560, %v553
          %v666 = vpack.c.b16 %v561, %v554
          %v667 = vpack.c.b16 %v562, %v555
          %v668 = vpack.c.b16 %v563, %v556
          %v669 = vpack.c.b16 %v564, %v557
          %v670 = vpack.c.b16 %v565, %v558
          %v671 = vpack.c.b16 %v566, %v559
          %v672 = vpack.c.b16 %v574, %v567
          %v673 = vpack.c.b16 %v575, %v568
          %v674 = vpack.c.b16 %v576, %v569
          %v675 = vpack.c.b16 %v577, %v570
          %v676 = vpack.c.b16 %v578, %v571
          %v677 = vpack.c.b16 %v579, %v572
          %v678 = vpack.c.b16 %v580, %v573
          %v679 = vpack.c.b16 %v588, %v581
          %v680 = vpack.c.b16 %v589, %v582
          %v681 = vpack.c.b16 %v590, %v583
          %v682 = vpack.c.b16 %v591, %v584
          %v683 = vpack.c.b16 %v592, %v585
          %v684 = vpack.c.b16 %v593, %v586
          %v685 = vpack.c.b16 %v594, %v587
          %v686 = vpack.c.b16 %v602, %v595
          %v687 = vpack.c.b16 %v603, %v596
          %v688 = vpack.c.b16 %v604, %v597
          %v689 = vpack.c.b16 %v605, %v598
          %v690 = vpack.c.b16 %v606, %v599
          %v691 = vpack.c.b16 %v607, %v600
          %v692 = vpack.c.b16 %v608, %v601
          %v693 = vpack.c.b16 %v616, %v609
          %v694 = vpack.c.b16 %v617, %v610
          %v695 = vpack.c.b16 %v618, %v611
          %v696 = vpack.c.b16 %v619, %v612
          %v697 = vpack.c.b16 %v620, %v613
          %v698 = vpack.c.b16 %v621, %v614
          %v699 = vpack.c.b16 %v622, %v615
          %v700 = vpack.c.b16 %v630, %v623
          %v701 = vpack.c.b16 %v631, %v624
          %v702 = vpack.c.b16 %v632, %v625
          %v703 = vpack.c.b16 %v633, %v626
          %v704 = vpack.c.b16 %v634, %v627
          %v705 = vpack.c.b16 %v635, %v628
          %v706 = vpack.c.b16 %v636, %v629
          %v707 = vpack.c.b16 %v644, %v637
          %v708 = vpack.c.b16 %v645, %v638
          %v709 = vpack.c.b16 %v646, %v639
          %v710 = vpack.c.b16 %v647, %v640
          %v711 = vpack.c.b16 %v648, %v641
          %v712 = vpack.c.b16 %v649, %v642
          %v713 = vpack.c.b16 %v650, %v643
          %v714 = vpack.c.b16 %v658, %v651
          %v715 = vpack.c.b16 %v659, %v652
          %v716 = vpack.c.b16 %v660, %v653
          %v717 = vpack.c.b16 %v661, %v654
          %v718 = vpack.c.b16 %v662, %v655
          %v719 = vpack.c.b16 %v663, %v656
          %v720 = vpack.c.b16 %v664, %v657
          %777 = vmatpush.bf16.xpose.msra.mxu0 %v714
          %778 = vmatpush.bf16.xpose.msra.mxu0 %v707
          %779 = vmatpush.bf16.xpose.msra.mxu0 %v700
          %780 = vmatpush.bf16.xpose.msra.mxu0 %v693
          %781 = vmatpush.bf16.xpose.msra.mxu0 %v686
          %782 = vmatpush.bf16.xpose.msra.mxu0 %v679
          %783 = vmatpush.bf16.xpose.msra.mxu0 %v672
          %784 = vmatpush.bf16.xpose.msra.mxu0 %v665
          %785 = vmatmul.bf16.gmra.mxu0 %v417
          %v786 = vpop.f32.mrf.mxu0
          %v787 = vadd.f32 %v488, %v786
          %v788 = vpop.f32.mrf.mxu0
          %789 = vdwg.mxu0
          %790 = vmatpush.bf16.xpose.msra.mxu0 %v715
          %791 = vmatpush.bf16.xpose.msra.mxu0 %v708
          %792 = vmatpush.bf16.xpose.msra.mxu0 %v701
          %793 = vmatpush.bf16.xpose.msra.mxu0 %v694
          %794 = vmatpush.bf16.xpose.msra.mxu0 %v687
          %795 = vmatpush.bf16.xpose.msra.mxu0 %v680
          %796 = vmatpush.bf16.xpose.msra.mxu0 %v673
          %797 = vmatpush.bf16.xpose.msra.mxu0 %v666
          %798 = vmatmul.bf16.gmra.mxu0 %v418
          %v799 = vpop.f32.mrf.mxu0
          %v800 = vadd.f32 %v787, %v799
          %v801 = vpop.f32.mrf.mxu0
          %802 = vdwg.mxu0
          %803 = vmatpush.bf16.xpose.msra.mxu0 %v716
          %804 = vmatpush.bf16.xpose.msra.mxu0 %v709
          %805 = vmatpush.bf16.xpose.msra.mxu0 %v702
          %806 = vmatpush.bf16.xpose.msra.mxu0 %v695
          %807 = vmatpush.bf16.xpose.msra.mxu0 %v688
          %808 = vmatpush.bf16.xpose.msra.mxu0 %v681
          %809 = vmatpush.bf16.xpose.msra.mxu0 %v674
          %810 = vmatpush.bf16.xpose.msra.mxu0 %v667
          %811 = vmatmul.bf16.gmra.mxu0 %v419
          %v812 = vpop.f32.mrf.mxu0
          %v813 = vadd.f32 %v800, %v812
          %v814 = vpop.f32.mrf.mxu0
          %815 = vdwg.mxu0
          %816 = vmatpush.bf16.xpose.msra.mxu0 %v717
          %817 = vmatpush.bf16.xpose.msra.mxu0 %v710
          %818 = vmatpush.bf16.xpose.msra.mxu0 %v703
          %819 = vmatpush.bf16.xpose.msra.mxu0 %v696
          %820 = vmatpush.bf16.xpose.msra.mxu0 %v689
          %821 = vmatpush.bf16.xpose.msra.mxu0 %v682
          %822 = vmatpush.bf16.xpose.msra.mxu0 %v675
          %823 = vmatpush.bf16.xpose.msra.mxu0 %v668
          %824 = vmatmul.bf16.gmra.mxu0 %v420
          %v825 = vpop.f32.mrf.mxu0
          %v826 = vadd.f32 %v813, %v825
          %v827 = vpop.f32.mrf.mxu0
          %828 = vdwg.mxu0
          %829 = vmatpush.bf16.xpose.msra.mxu0 %v718
          %830 = vmatpush.bf16.xpose.msra.mxu0 %v711
          %831 = vmatpush.bf16.xpose.msra.mxu0 %v704
          %832 = vmatpush.bf16.xpose.msra.mxu0 %v697
          %833 = vmatpush.bf16.xpose.msra.mxu0 %v690
          %834 = vmatpush.bf16.xpose.msra.mxu0 %v683
          %835 = vmatpush.bf16.xpose.msra.mxu0 %v676
          %836 = vmatpush.bf16.xpose.msra.mxu0 %v669
          %837 = vmatmul.bf16.gmra.mxu0 %v421
          %v838 = vpop.f32.mrf.mxu0
          %v839 = vadd.f32 %v826, %v838
          %v840 = vpop.f32.mrf.mxu0
          %841 = vdwg.mxu0
          %842 = vmatpush.bf16.xpose.msra.mxu0 %v719
          %843 = vmatpush.bf16.xpose.msra.mxu0 %v712
          %844 = vmatpush.bf16.xpose.msra.mxu0 %v705
          %845 = vmatpush.bf16.xpose.msra.mxu0 %v698
          %846 = vmatpush.bf16.xpose.msra.mxu0 %v691
          %847 = vmatpush.bf16.xpose.msra.mxu0 %v684
          %848 = vmatpush.bf16.xpose.msra.mxu0 %v677
          %849 = vmatpush.bf16.xpose.msra.mxu0 %v670
          %850 = vmatmul.bf16.gmra.mxu0 %v422
          %v851 = vpop.f32.mrf.mxu0
          %v852 = vadd.f32 %v839, %v851
          %v853 = vpop.f32.mrf.mxu0
          %854 = vdwg.mxu0
          %855 = vmatpush.bf16.xpose.msra.mxu0 %v720
          %856 = vmatpush.bf16.xpose.msra.mxu0 %v713
          %857 = vmatpush.bf16.xpose.msra.mxu0 %v706
          %858 = vmatpush.bf16.xpose.msra.mxu0 %v699
          %859 = vmatpush.bf16.xpose.msra.mxu0 %v692
          %860 = vmatpush.bf16.xpose.msra.mxu0 %v685
          %861 = vmatpush.bf16.xpose.msra.mxu0 %v678
          %862 = vmatpush.bf16.xpose.msra.mxu0 %v671
          %863 = vmatmul.bf16.gmra.mxu0 %v423
          %v864 = vpop.f32.mrf.mxu0
          %v865 = vadd.f32 %v852, %v864
          %v866 = vpop.f32.mrf.mxu0
          %867 = vdwg.mxu0
          %v868 = vtanh.pop %v865
          %v869 = vpack.c.bf16 %v868, %v868
          %vm870 = vcmask 1040384
          %vm871 = vsmask.f32 256
          %vm872 = vmand %vm870, %vm871
          %v873 = vld [vmem:[#allocation3] sm:$0x1]
          %v874 = vsel %vm872, %v869, %v873
          %875 = vst [vmem:[#allocation3] sm:$0x1] %v874
          %vm876 = vcmask 0
          %877 = vst.msk [vmem:[#allocation4] sm:$0x1] %vm876, -inf
          %878 = vst.msk [vmem:[#allocation5] sm:$0x1] %vm876, 0.0
        $region52: #{tpu_custom_call.1} parent=35 // pred_fallthru
          _
        %v879 = vld [vmem:[#allocation3] sm:$0x1]
        %v880 = vld [vmem:[%s228] sm:$0xf]
        %v881 = vld [vmem:[%s228 + $0x4] sm:$0xf]
        %v882 = vld [vmem:[%s228 + $0x8] sm:$0xf]
        %v883 = vld [vmem:[%s228 + $0xc] sm:$0xf]
        %v884 = vld [vmem:[%s228 + $0x10] sm:$0xf]
        %v885 = vld [vmem:[%s228 + $0x14] sm:$0xf]
        %v886 = vld [vmem:[%s228 + $0x18] sm:$0xf]
        %v887 = vld [vmem:[%s228 + $0x1c] sm:$0xf]
        %v888 = vld [vmem:[%s228 + $0x20] sm:$0xf]
        %v889 = vld [vmem:[%s228 + $0x24] sm:$0xf]
        %v890 = vld [vmem:[%s228 + $0x28] sm:$0xf]
        %v891 = vld [vmem:[%s228 + $0x2c] sm:$0xf]
        %v892 = vld [vmem:[%s228 + $0x30] sm:$0xf]
        %v893 = vld [vmem:[%s228 + $0x34] sm:$0xf]
        %v894 = vld [vmem:[%s228 + $0x38] sm:$0xf]
        %v895 = vld [vmem:[%s228 + $0x3c] sm:$0xf]
        %v896 = vld [vmem:[%s228 + $0x40] sm:$0xf]
        %v897 = vld [vmem:[%s228 + $0x44] sm:$0xf]
        %v898 = vld [vmem:[%s228 + $0x48] sm:$0xf]
        %v899 = vld [vmem:[%s228 + $0x4c] sm:$0xf]
        %v900 = vld [vmem:[%s228 + $0x50] sm:$0xf]
        %v901 = vld [vmem:[%s228 + $0x54] sm:$0xf]
        %v902 = vld [vmem:[%s228 + $0x58] sm:$0xf]
        %v903 = vld [vmem:[%s228 + $0x5c] sm:$0xf]
        %v904 = vld [vmem:[%s228 + $0x60] sm:$0xf]
        %v905 = vld [vmem:[%s228 + $0x64] sm:$0xf]
        %v906 = vld [vmem:[%s228 + $0x68] sm:$0xf]
        %v907 = vld [vmem:[%s228 + $0x6c] sm:$0xf]
        %v908 = vld [vmem:[%s228 + $0x70] sm:$0xf]
        %v909 = vld [vmem:[%s228 + $0x74] sm:$0xf]
        %v910 = vld [vmem:[%s228 + $0x78] sm:$0xf]
        %v911 = vld [vmem:[%s228 + $0x7c] sm:$0xf]
        %v912 = vld [vmem:[%s228 + $0x80] sm:$0xf]
        %v913 = vld [vmem:[%s228 + $0x84] sm:$0xf]
        %v914 = vld [vmem:[%s228 + $0x88] sm:$0xf]
        %v915 = vld [vmem:[%s228 + $0x8c] sm:$0xf]
        %v916 = vld [vmem:[%s228 + $0x90] sm:$0xf]
        %v917 = vld [vmem:[%s228 + $0x94] sm:$0xf]
        %v918 = vld [vmem:[%s228 + $0x98] sm:$0xf]
        %v919 = vld [vmem:[%s228 + $0x9c] sm:$0xf]
        %v920 = vld [vmem:[%s228 + $0xa0] sm:$0xf]
        %v921 = vld [vmem:[%s228 + $0xa4] sm:$0xf]
        %v922 = vld [vmem:[%s228 + $0xa8] sm:$0xf]
        %v923 = vld [vmem:[%s228 + $0xac] sm:$0xf]
        %v924 = vld [vmem:[%s228 + $0xb0] sm:$0xf]
        %v925 = vld [vmem:[%s228 + $0xb4] sm:$0xf]
        %v926 = vld [vmem:[%s228 + $0xb8] sm:$0xf]
        %v927 = vld [vmem:[%s228 + $0xbc] sm:$0xf]
        %v928 = vld [vmem:[%s228 + $0xc0] sm:$0xf]
        %v929 = vld [vmem:[%s228 + $0xc4] sm:$0xf]
        %v930 = vld [vmem:[%s228 + $0xc8] sm:$0xf]
        %v931 = vld [vmem:[%s228 + $0xcc] sm:$0xf]
        %v932 = vld [vmem:[%s228 + $0xd0] sm:$0xf]
        %v933 = vld [vmem:[%s228 + $0xd4] sm:$0xf]
        %v934 = vld [vmem:[%s228 + $0xd8] sm:$0xf]
        %v935 = vld [vmem:[%s228 + $0xdc] sm:$0xf]
        %v936 = vld [vmem:[%s228 + $0xe0] sm:$0xf]
        %v937 = vld [vmem:[%s228 + $0xe4] sm:$0xf]
        %v938 = vld [vmem:[%s228 + $0xe8] sm:$0xf]
        %v939 = vld [vmem:[%s228 + $0xec] sm:$0xf]
        %v940 = vld [vmem:[%s228 + $0xf0] sm:$0xf]
        %v941 = vld [vmem:[%s228 + $0xf4] sm:$0xf]
        %v942 = vld [vmem:[%s228 + $0xf8] sm:$0xf]
        %v943 = vld [vmem:[%s228 + $0xfc] sm:$0xf]
        %v944 = vld [vmem:[%s243] sm:$0xf]
        %v1009 = vunpack.c.l.b16 %v880
        %v1010 = vunpack.c.l.b16 %v881
        %v1011 = vunpack.c.l.b16 %v882
        %v1012 = vunpack.c.l.b16 %v883
        %v1013 = vunpack.c.l.b16 %v884
        %v1014 = vunpack.c.l.b16 %v885
        %v1015 = vunpack.c.l.b16 %v886
        %v1016 = vunpack.c.l.b16 %v887
        %v1017 = vunpack.c.l.b16 %v888
        %v1018 = vunpack.c.l.b16 %v889
        %v1019 = vunpack.c.l.b16 %v890
        %v1020 = vunpack.c.l.b16 %v891
        %v1021 = vunpack.c.l.b16 %v892
        %v1022 = vunpack.c.l.b16 %v893
        %v1023 = vunpack.c.l.b16 %v894
        %v1024 = vunpack.c.l.b16 %v895
        %v1025 = vunpack.c.l.b16 %v896
        %v1026 = vunpack.c.l.b16 %v897
        %v1027 = vunpack.c.l.b16 %v898
        %v1028 = vunpack.c.l.b16 %v899
        %v1029 = vunpack.c.l.b16 %v900
        %v1030 = vunpack.c.l.b16 %v901
        %v1031 = vunpack.c.l.b16 %v902
        %v1032 = vunpack.c.l.b16 %v903
        %v1033 = vunpack.c.l.b16 %v904
        %v1034 = vunpack.c.l.b16 %v905
        %v1035 = vunpack.c.l.b16 %v906
        %v1036 = vunpack.c.l.b16 %v907
        %v1037 = vunpack.c.l.b16 %v908
        %v1038 = vunpack.c.l.b16 %v909
        %v1039 = vunpack.c.l.b16 %v910
        %v1040 = vunpack.c.l.b16 %v911
        %v1041 = vunpack.c.l.b16 %v912
        %v1042 = vunpack.c.l.b16 %v913
        %v1043 = vunpack.c.l.b16 %v914
        %v1044 = vunpack.c.l.b16 %v915
        %v1045 = vunpack.c.l.b16 %v916
        %v1046 = vunpack.c.l.b16 %v917
        %v1047 = vunpack.c.l.b16 %v918
        %v1048 = vunpack.c.l.b16 %v919
        %v1049 = vunpack.c.l.b16 %v920
        %v1050 = vunpack.c.l.b16 %v921
        %v1051 = vunpack.c.l.b16 %v922
        %v1052 = vunpack.c.l.b16 %v923
        %v1053 = vunpack.c.l.b16 %v924
        %v1054 = vunpack.c.l.b16 %v925
        %v1055 = vunpack.c.l.b16 %v926
        %v1056 = vunpack.c.l.b16 %v927
        %v1057 = vunpack.c.l.b16 %v928
        %v1058 = vunpack.c.l.b16 %v929
        %v1059 = vunpack.c.l.b16 %v930
        %v1060 = vunpack.c.l.b16 %v931
        %v1061 = vunpack.c.l.b16 %v932
        %v1062 = vunpack.c.l.b16 %v933
        %v1063 = vunpack.c.l.b16 %v934
        %v1064 = vunpack.c.l.b16 %v935
        %v1065 = vunpack.c.l.b16 %v936
        %v1066 = vunpack.c.l.b16 %v937
        %v1067 = vunpack.c.l.b16 %v938
        %v1068 = vunpack.c.l.b16 %v939
        %v1069 = vunpack.c.l.b16 %v940
        %v1070 = vunpack.c.l.b16 %v941
        %v1071 = vunpack.c.l.b16 %v942
        %v1072 = vunpack.c.l.b16 %v943
        %v1073 = vpack.c.b16 %v1010, %v1009
        %v1074 = vpack.c.b16 %v1012, %v1011
        %v1075 = vpack.c.b16 %v1014, %v1013
        %v1076 = vpack.c.b16 %v1016, %v1015
        %v1077 = vpack.c.b16 %v1018, %v1017
        %v1078 = vpack.c.b16 %v1020, %v1019
        %v1079 = vpack.c.b16 %v1022, %v1021
        %v1080 = vpack.c.b16 %v1024, %v1023
        %v1081 = vpack.c.b16 %v1026, %v1025
        %v1082 = vpack.c.b16 %v1028, %v1027
        %v1083 = vpack.c.b16 %v1030, %v1029
        %v1084 = vpack.c.b16 %v1032, %v1031
        %v1085 = vpack.c.b16 %v1034, %v1033
        %v1086 = vpack.c.b16 %v1036, %v1035
        %v1087 = vpack.c.b16 %v1038, %v1037
        %v1088 = vpack.c.b16 %v1040, %v1039
        %v1089 = vpack.c.b16 %v1042, %v1041
        %v1090 = vpack.c.b16 %v1044, %v1043
        %v1091 = vpack.c.b16 %v1046, %v1045
        %v1092 = vpack.c.b16 %v1048, %v1047
        %v1093 = vpack.c.b16 %v1050, %v1049
        %v1094 = vpack.c.b16 %v1052, %v1051
        %v1095 = vpack.c.b16 %v1054, %v1053
        %v1096 = vpack.c.b16 %v1056, %v1055
        %v1097 = vpack.c.b16 %v1058, %v1057
        %v1098 = vpack.c.b16 %v1060, %v1059
        %v1099 = vpack.c.b16 %v1062, %v1061
        %v1100 = vpack.c.b16 %v1064, %v1063
        %v1101 = vpack.c.b16 %v1066, %v1065
        %v1102 = vpack.c.b16 %v1068, %v1067
        %v1103 = vpack.c.b16 %v1070, %v1069
        %v1104 = vpack.c.b16 %v1072, %v1071
        %v1138 = vperm.slane %v944, 0
        %v1139 = vperm.slane %v944, 1
        %v1140 = vperm.slane %v944, 2
        %v1141 = vperm.slane %v944, 3
        %1146 = vmatpush.bf16.xpose.msra.mxu0 %v1080
        %1147 = vmatpush.bf16.xpose.msra.mxu0 %v1079
        %1148 = vmatpush.bf16.xpose.msra.mxu0 %v1078
        %1149 = vmatpush.bf16.xpose.msra.mxu0 %v1077
        %1150 = vmatpush.bf16.xpose.msra.mxu0 %v1076
        %1151 = vmatpush.bf16.xpose.msra.mxu0 %v1075
        %1152 = vmatpush.bf16.xpose.msra.mxu0 %v1074
        %1153 = vmatpush.bf16.xpose.msra.mxu0 %v1073
        %1154 = vmatmul.bf16.gmra.mxu0 %v879
        %v1155 = vpop.f32.mrf.mxu0
        %v1156 = vadd.f32 %v1138, %v1155
        %v1157 = vpop.f32.mrf.mxu0
        %1158 = vdwg.mxu0
        %1159 = vmatpush.bf16.xpose.msra.mxu0 %v1088
        %1160 = vmatpush.bf16.xpose.msra.mxu0 %v1087
        %1161 = vmatpush.bf16.xpose.msra.mxu0 %v1086
        %1162 = vmatpush.bf16.xpose.msra.mxu0 %v1085
        %1163 = vmatpush.bf16.xpose.msra.mxu0 %v1084
        %1164 = vmatpush.bf16.xpose.msra.mxu0 %v1083
        %1165 = vmatpush.bf16.xpose.msra.mxu0 %v1082
        %1166 = vmatpush.bf16.xpose.msra.mxu0 %v1081
        %1167 = vmatmul.bf16.gmra.mxu0 %v879
        %v1168 = vpop.f32.mrf.mxu0
        %v1169 = vadd.f32 %v1139, %v1168
        %v1170 = vpop.f32.mrf.mxu0
        %1171 = vdwg.mxu0
        %1172 = vmatpush.bf16.xpose.msra.mxu0 %v1096
        %1173 = vmatpush.bf16.xpose.msra.mxu0 %v1095
        %1174 = vmatpush.bf16.xpose.msra.mxu0 %v1094
        %1175 = vmatpush.bf16.xpose.msra.mxu0 %v1093
        %1176 = vmatpush.bf16.xpose.msra.mxu0 %v1092
        %1177 = vmatpush.bf16.xpose.msra.mxu0 %v1091
        %1178 = vmatpush.bf16.xpose.msra.mxu0 %v1090
        %1179 = vmatpush.bf16.xpose.msra.mxu0 %v1089
        %1180 = vmatmul.bf16.gmra.mxu0 %v879
        %v1181 = vpop.f32.mrf.mxu0
        %v1182 = vadd.f32 %v1140, %v1181
        %v1183 = vpop.f32.mrf.mxu0
        %1184 = vdwg.mxu0
        %1185 = vmatpush.bf16.xpose.msra.mxu0 %v1104
        %1186 = vmatpush.bf16.xpose.msra.mxu0 %v1103
        %1187 = vmatpush.bf16.xpose.msra.mxu0 %v1102
        %1188 = vmatpush.bf16.xpose.msra.mxu0 %v1101
        %1189 = vmatpush.bf16.xpose.msra.mxu0 %v1100
        %1190 = vmatpush.bf16.xpose.msra.mxu0 %v1099
        %1191 = vmatpush.bf16.xpose.msra.mxu0 %v1098
        %1192 = vmatpush.bf16.xpose.msra.mxu0 %v1097
        %1193 = vmatmul.bf16.gmra.mxu0 %v879
        %v1194 = vpop.f32.mrf.mxu0
        %v1195 = vadd.f32 %v1141, %v1194
        %v1196 = vpop.f32.mrf.mxu0
        %1197 = vdwg.mxu0
        %s1198 = smul.u32 %s30, 512
        %v1203 = vrot.slane %v1169, 7
        %v1204 = vrot.slane %v1182, 6
        %v1205 = vrot.slane %v1195, 5
        %vm1206 = vcmask 1040384
        %v1207 = vsel %vm1206, %v1156, %v1203
        %vm1208 = vcmask 1042434
        %v1209 = vsel %vm1208, %v1204, %v1205
        %vm1210 = vcmask 1041408
        %v1211 = vsel %vm1210, %v1207, %v1209
        %s1213 = sshra.s32 %s1198, 7
        %s1214 = sand.u32 %s1198, 127
        %s1215 = scalar_lea.vmem [#allocation15], %s1213
        %v1216 = vlaneseq
        %vm1217 = vcmp.ge.s32.totalorder %v1216, 0
        %vm1218 = vcmp.lt.s32.totalorder %v1216, 512
        %vm1219 = vmand %vm1217, %vm1218
        %1220 = vst.msk [vmem:[%s1215] sm:$0xf] %vm1219, %v1211
        %v1221 = vld [vmem:[#allocation4] sm:$0x1]
        %v1222 = vsel %vm1206, %v1156, -inf
        %v1223 = vsel %vm1206, %v1169, -inf
        %v1224 = vsel %vm1206, %v1182, -inf
        %v1225 = vsel %vm1206, %v1195, -inf
        %v1226 = vmax.f32 %v1222, %v1223
        %v1227 = vmax.f32 %v1224, %v1225
        %v1228 = vmax.f32 %v1226, %v1227
        %1229 = vmax.xlane.f32.xlu0 %v1228
        %v1230 = vpop.xlane.xlu0 %1229
        %v1231 = vmax.f32 %v1221, %v1230
        %v1232 = vld [vmem:[#allocation5] sm:$0x1]
        %v1233 = vsub.f32 %v1221, %v1231
        %v1234 = vmul.f32 %v1233, 1.442695
        %v1235 = vpow.pop %v1234
        %v1236 = vmul.f32 %v1232, %v1235
        %1238 = vset.pattern.permute.xlu0 0
        %1239 = vperm.xlu0 %1238, %v1231
        %v1240 = vpop.permute.xlu0 %1239
        %v1242 = vperm.slane %v1240, 0
        %v1243 = vsub.f32 %v1156, %v1242
        %v1244 = vsub.f32 %v1169, %v1242
        %v1245 = vsub.f32 %v1182, %v1242
        %v1246 = vsub.f32 %v1195, %v1242
        %v1247 = vmul.f32 %v1243, 1.442695
        %v1248 = vpow.pop %v1247
        %v1249 = vmul.f32 %v1244, 1.442695
        %v1250 = vpow.pop %v1249
        %v1251 = vmul.f32 %v1245, 1.442695
        %v1252 = vpow.pop %v1251
        %v1253 = vmul.f32 %v1246, 1.442695
        %v1254 = vpow.pop %v1253
        %v1255 = vsel %vm1206, %v1248, 0.0
        %v1256 = vsel %vm1206, %v1250, 0.0
        %v1257 = vadd.f32 %v1255, %v1256
        %v1258 = vsel %vm1206, %v1252, 0.0
        %v1259 = vadd.f32 %v1257, %v1258
        %v1260 = vsel %vm1206, %v1254, 0.0
        %v1261 = vadd.f32 %v1259, %v1260
        %1262 = vadd.xlane.f32.xlu0 %v1261
        %v1263 = vpop.xlane.xlu0 %1262
        %v1264 = vadd.f32 %v1236, %v1263
        %vm1265 = vcmask 0
        %1266 = vst.msk [vmem:[#allocation5] sm:$0x1] %vm1265, %v1264
        %1267 = vst.msk [vmem:[#allocation4] sm:$0x1] %vm1265, %v1231
        %p1268 = scmp.eq.s32.totalorder %s30, 1
        // Predicated region
        $region81: #{tpu_custom_call.1} parent=35 // pred_check
          %p1269 = pneg %p1268
        $region82: #{tpu_custom_call.1} parent=35 // pred_check_branch
          %1271 = sbr.rel (%p1269) target = $region84
        $region83: #{tpu_custom_call.1} parent=35 // pred_region
          %v1272 = vld [vmem:[#allocation4] sm:$0x1]
          %v1273 = vld [vmem:[#allocation5] sm:$0x1]
          %v1274 = vlog2.pop %v1273
          %v1275 = vmul.f32 %v1274, 0.6931472
          %v1276 = vadd.f32 %v1272, %v1275
          loop: start=0, step=1, limit=2
          $region85: #{tpu_custom_call.1} parent=83 // loop_pre_header
            _
          $region86: #{tpu_custom_call.1} parent=83 // loop_header
            %s1278 = sphi 0, %s1282
            %p1279 = scmp.ge.s32.totalorder %s1278, 2
          $region87: #{tpu_custom_call.1} parent=83 // loop_header_branch
            %1281 = sbr.rel (%p1279) target = $region91
          $region88: #{tpu_custom_call.1} parent=83 // loop_body
            %s1283 = smul.u32 %s1278, 512
            %s1284 = sshra.s32 %s1283, 7
            %s1285 = sand.u32 %s1283, 127
            %s1286 = scalar_lea.vmem [#allocation15], %s1284
            %v1287 = vld [vmem:[%s1286] sm:$0xf]
            %1289 = vset.pattern.permute.xlu0 0
            %1290 = vperm.xlu0 %1289, %v1276
            %v1291 = vpop.permute.xlu0 %1290
            %v1293 = vperm.slane %v1291, 0
            %v1294 = vsub.f32 %v1287, %v1293
            %1295 = vst.msk [vmem:[%s1286] sm:$0xf] %vm1219, %v1294
          $region89: #{tpu_custom_call.1} parent=83 // loop_footer
            %s1282 = sadd.s32 1, %s1278
          $region90: #{tpu_custom_call.1} parent=83 // loop_footer_branch
            %1277 = sbr.rel target = $region86
          $region91: #{tpu_custom_call.1} parent=83 // loop_exit
            _
        $region84: #{tpu_custom_call.1} parent=35 // pred_fallthru
          _
        // Predicated region
        $region92: #{tpu_custom_call.1} parent=35 // pred_check
          %p1296 = pneg %p137
        $region93: #{tpu_custom_call.1} parent=35 // pred_check_branch
          %1298 = sbr.rel (%p1296) target = $region95
        $region94: #{tpu_custom_call.1} parent=35 // pred_region
          %1300 = vsyncadd [#allocation11], 0
          %s1302 = sshll.u32 [#allocation15], 4
          %s1303 = int_to_ptr.vmem [resolvable:$true] %s1302
          %s1304 = sshll.u32 %s6, 4
          %s1305 = int_to_ptr.hbm [resolvable:$true] %s1304
          %1307 = dma.vmem_to_hbm [thread:$0]  %s1303, 128, %s1305, [#allocation11]
        $region95: #{tpu_custom_call.1} parent=35 // pred_fallthru
          _
        // Predicated region
        $region96: #{tpu_custom_call.1} parent=35 // pred_check
          %p1308 = pneg %p137
        $region97: #{tpu_custom_call.1} parent=35 // pred_check_branch
          %1310 = sbr.rel (%p1308) target = $region99
        $region98: #{tpu_custom_call.1} parent=35 // pred_region
          %1312 = dma.done [#allocation11], 128
        $region99: #{tpu_custom_call.1} parent=35 // pred_fallthru
          _
      $region36: #{tpu_custom_call.1} parent=5 // pred_fallthru
        _
      %p1313 = scmp.le.s32.totalorder 2, %s25
      // Predicated region
      $region100: #{tpu_custom_call.1} parent=5 // pred_check
        %p1314 = pneg %p1313
      $region101: #{tpu_custom_call.1} parent=5 // pred_check_branch
        %1316 = sbr.rel (%p1314) target = $region103
      $region102: #{tpu_custom_call.1} parent=5 // pred_region
        %s1317 = ssub.s32 %s25, 2
      $region103: #{tpu_custom_call.1} parent=5 // pred_fallthru
        _
    $region6: #{tpu_custom_call.1} parent=1 // loop_footer
      %s29 = sadd.s32 1, %s25
    $region7: #{tpu_custom_call.1} parent=1 // loop_footer_branch
      %24 = sbr.rel target = $region3
    $region8: #{tpu_custom_call.1} parent=1 // loop_exit
      _
    %1318 = vsyncpa [#allocation10], 1
    %s1319 = scalar_lea.sflag [#allocation10], 1
    %1320 = vsyncpa %s1319, 1
    %1321 = vsyncpa [#allocation13], 1
    %1322 = vsyncpa [#allocation11], 1
    %s1323 = scalar_lea.sflag [#allocation11], 1
    %1324 = vsyncpa %s1323, 1
  %1325 = vsyncmov [#allocation6]
  %s1326 = vpop.sfrf %1325
  %p1327 = scmp.eq.s32.totalorder %s1326, 0
  %p1328 = pneg %p1327
  %1330 = shalt.err (%p1328)

</llo_original>
